<compile_context>
chip_gen: v7x
topology: tpu7x:2x2x1
jax: 0.10.0
libtpu: 0.0.40
codegen_flags: <defaults>
</compile_context>

<pallas_src>
import functools

import jax
import jax.numpy as jnp
from jax import lax
from jax.experimental import pallas as pl
from jax.experimental.pallas import tpu as pltpu


def _dropblock_mask(mat_ref, *, gamma, block_size, H, W):
    """keep-mask (1 = keep) for one (bc, H+2p, W+2p) padded uniform-matrix tile."""
    mask_inv = None
    for di in range(block_size):
        for dj in range(block_size):
            tap = mat_ref[:, pl.ds(di, H), pl.ds(dj, W)]
            seed = (tap < gamma).astype(jnp.float32)
            mask_inv = seed if mask_inv is None else jnp.maximum(mask_inv, seed)
    return 1.0 - mask_inv


def _mask_sum_kernel(mat_ref, sum_ref, *, gamma, block_size, H, W):
    """Accumulate sum(mask) over all N*C tiles into a resident (1,1) output."""
    @pl.when(pl.program_id(0) == 0)
    def _():
        sum_ref[...] = jnp.zeros_like(sum_ref)
    mask = _dropblock_mask(mat_ref, gamma=gamma, block_size=block_size, H=H, W=W)
    sum_ref[...] = sum_ref[...] + jnp.sum(mask)


def _apply_kernel(sum_ref, x_ref, mat_ref, y_ref, *, gamma, block_size, H, W, numel):
    """y = x * mask * (numel / sum(mask)); mask recomputed in-register."""
    mask = _dropblock_mask(mat_ref, gamma=gamma, block_size=block_size, H=H, W=W)
    scale = numel / sum_ref[0, 0]                       # scalar from SMEM
    y_ref[...] = (x_ref[...] * mask * scale).astype(y_ref.dtype)


def dropblock(x_nchw, matrix, *, block_size, keep_prob, training=True, bc=None):
    """DropBlock forward (NCHW). `matrix` plays the role of torch.rand(x.shape)."""
    if (not training) or keep_prob == 1:
        return x_nchw

    N, C, H, W = x_nchw.shape
    bs = block_size
    assert bs % 2 == 1, "block_size must be odd so the pooled mask matches x's shape"
    p = bs // 2

    gamma = (1.0 - keep_prob) / (bs * bs)
    for s in (H, W):
        gamma *= s / (s - bs + 1)

    NC = N * C
    if bc is None:
        bc = min(NC, 256)                      # large tiles amortize per-step overhead
    NCp = -(-NC // bc) * bc
    nb = NCp // bc

    x3 = x_nchw.reshape(NC, H, W)
    m3 = matrix.reshape(NC, H, W).astype(jnp.float32)
    # Spatial halo: pad value >> gamma -> seed 0.  Equivalent to max_pool2d's
    # implicit -inf padding because the thresholded seed is non-negative and
    # every pooling window contains at least one real element.
    m3p = jnp.pad(m3, ((0, 0), (p, p), (p, p)), constant_values=1e9)
    if NCp != NC:
        # Padded N*C rows: matrix 0.0 < gamma -> seed 1 -> mask 0, so they add
        # nothing to sum(mask) and produce y == 0 rows that are sliced off.
        m3p = jnp.pad(m3p, ((0, NCp - NC), (0, 0), (0, 0)), constant_values=0.0)
        x3 = jnp.pad(x3, ((0, NCp - NC), (0, 0), (0, 0)))

    Hp, Wp = H + 2 * p, W + 2 * p

    # Pass 1: global sum of the keep-mask (resident scalar accumulator).
    mask_sum = pl.pallas_call(
        functools.partial(_mask_sum_kernel, gamma=gamma, block_size=bs, H=H, W=W),
        out_shape=jax.ShapeDtypeStruct((1, 1), jnp.float32),
        grid=(nb,),
        in_specs=[pl.BlockSpec((bc, Hp, Wp), lambda i: (i, 0, 0))],
        out_specs=pl.BlockSpec((1, 1), lambda i: (0, 0)),
        compiler_params=pltpu.CompilerParams(dimension_semantics=("arbitrary",)),
    )(m3p)

    # Pass 2: y = x * mask * numel/sum.  The mask is recomputed per tile
    # instead of being written to / re-read from HBM.
    numel = float(N * C * H * W)
    y3 = pl.pallas_call(
        functools.partial(_apply_kernel, gamma=gamma, block_size=bs, H=H, W=W,
                          numel=numel),
        out_shape=jax.ShapeDtypeStruct((NCp, H, W), x_nchw.dtype),
        grid=(nb,),
        in_specs=[
            pl.BlockSpec(memory_space=pltpu.MemorySpace.SMEM),        # (1,1) mask sum
            pl.BlockSpec((bc, H, W), lambda i: (i, 0, 0)),            # x tiles
            pl.BlockSpec((bc, Hp, Wp), lambda i: (i, 0, 0)),          # padded rand
        ],
        out_specs=pl.BlockSpec((bc, H, W), lambda i: (i, 0, 0)),
        compiler_params=pltpu.CompilerParams(dimension_semantics=("parallel",)),
    )(mask_sum, x3, m3p)

    return y3[:NC].reshape(N, C, H, W)


def _reference_dropblock(x, matrix, *, block_size, keep_prob):
    """Pure-JAX reference matching the PyTorch DropBlock training path."""
    bs = block_size
    p = bs // 2
    H, W = x.shape[2], x.shape[3]
    gamma = (1.0 - keep_prob) / (bs * bs)
    for s in (H, W):
        gamma *= s / (s - bs + 1)
    seed = (matrix < gamma).astype(jnp.float32)
    mask_inv = lax.reduce_window(
        seed, -jnp.inf, lax.max, (1, 1, bs, bs), (1, 1, 1, 1),
        padding=((0, 0), (0, 0), (p, p), (p, p)))
    mask = 1.0 - mask_inv
    return x * mask * (mask.size / jnp.sum(mask))


if __name__ == "__main__":
    block_size, keep_prob = 3, 0.9
    key = jax.random.PRNGKey(0)
    kx, km = jax.random.split(key)
    x = jax.random.normal(kx, (2, 4, 16, 16), jnp.float32)        # NCHW input
    matrix = jax.random.uniform(km, x.shape, jnp.float32)         # == torch.rand(x.shape)

    fwd = jax.jit(functools.partial(dropblock, block_size=block_size,
                                    keep_prob=keep_prob, training=True))
    y = jax.block_until_ready(fwd(x, matrix))
    assert y.shape == x.shape, y.shape

    ref = jax.block_until_ready(
        _reference_dropblock(x, matrix, block_size=block_size, keep_prob=keep_prob))
    assert jnp.allclose(y, ref, rtol=1e-5, atol=1e-5), float(jnp.max(jnp.abs(y - ref)))

    # Eval-mode / keep_prob == 1 paths are the identity, as in the PyTorch module.
    assert jnp.array_equal(
        dropblock(x, matrix, block_size=block_size, keep_prob=1.0, training=True), x)
    assert jnp.array_equal(
        dropblock(x, matrix, block_size=block_size, keep_prob=keep_prob,
                  training=False), x)

    print("KERNEL_OK")
</pallas_src>

<mosaic_0001>
module attributes {stable_mosaic.version = 11 : i64} {
  func.func @_apply_kernel(%arg0: i32, %arg1: memref<1x1xf32, #tpu.memory_space<smem>>, %arg2: memref<8x16x16xf32, #tpu.memory_space<vmem>>, %arg3: memref<8x18x18xf32, #tpu.memory_space<vmem>>, %arg4: memref<8x16x16xf32, #tpu.memory_space<vmem>>) attributes {dimension_semantics = [#tpu.dimension_semantics<parallel>], iteration_bounds = array<i64: 1>, scalar_prefetch = 0 : i64, scratch_operands = 0 : i64, tpu.core_type = #tpu.core_type<tc>, window_params = [{transform_indices = @transform_0, window_bounds = array<i64: 1, 1>}, {transform_indices = @transform_1, window_bounds = array<i64: 8, 16, 16>}, {transform_indices = @transform_2, window_bounds = array<i64: 8, 18, 18>}, {transform_indices = @transform_3, window_bounds = array<i64: 8, 16, 16>}]} {
    %c0 = arith.constant 0 : index
    %c0_0 = arith.constant 0 : index
    %c0_1 = arith.constant 0 : index
    %0 = vector.load %arg3[%c0, %c0_0, %c0_1] : memref<8x18x18xf32, #tpu.memory_space<vmem>>, vector<8x16x16xf32>
    %cst = arith.constant 0.0145124719 : f32
    %1 = vector.broadcast %cst : f32 to vector<8x16x16xf32>
    %2 = arith.cmpf olt, %0, %1 : vector<8x16x16xf32>
    %3 = arith.extui %2 : vector<8x16x16xi1> to vector<8x16x16xi32>
    %4 = arith.sitofp %3 : vector<8x16x16xi32> to vector<8x16x16xf32>
    %c0_2 = arith.constant 0 : index
    %c0_3 = arith.constant 0 : index
    %c1 = arith.constant 1 : index
    %5 = vector.load %arg3[%c0_2, %c0_3, %c1] : memref<8x18x18xf32, #tpu.memory_space<vmem>>, vector<8x16x16xf32>
    %cst_4 = arith.constant 0.0145124719 : f32
    %6 = vector.broadcast %cst_4 : f32 to vector<8x16x16xf32>
    %7 = arith.cmpf olt, %5, %6 : vector<8x16x16xf32>
    %8 = arith.extui %7 : vector<8x16x16xi1> to vector<8x16x16xi32>
    %9 = arith.sitofp %8 : vector<8x16x16xi32> to vector<8x16x16xf32>
    %10 = arith.maximumf %4, %9 : vector<8x16x16xf32>
    %c0_5 = arith.constant 0 : index
    %c0_6 = arith.constant 0 : index
    %c2 = arith.constant 2 : index
    %11 = vector.load %arg3[%c0_5, %c0_6, %c2] : memref<8x18x18xf32, #tpu.memory_space<vmem>>, vector<8x16x16xf32>
    %cst_7 = arith.constant 0.0145124719 : f32
    %12 = vector.broadcast %cst_7 : f32 to vector<8x16x16xf32>
    %13 = arith.cmpf olt, %11, %12 : vector<8x16x16xf32>
    %14 = arith.extui %13 : vector<8x16x16xi1> to vector<8x16x16xi32>
    %15 = arith.sitofp %14 : vector<8x16x16xi32> to vector<8x16x16xf32>
    %16 = arith.maximumf %10, %15 : vector<8x16x16xf32>
    %c0_8 = arith.constant 0 : index
    %c1_9 = arith.constant 1 : index
    %c0_10 = arith.constant 0 : index
    %17 = vector.load %arg3[%c0_8, %c1_9, %c0_10] : memref<8x18x18xf32, #tpu.memory_space<vmem>>, vector<8x16x16xf32>
    %cst_11 = arith.constant 0.0145124719 : f32
    %18 = vector.broadcast %cst_11 : f32 to vector<8x16x16xf32>
    %19 = arith.cmpf olt, %17, %18 : vector<8x16x16xf32>
    %20 = arith.extui %19 : vector<8x16x16xi1> to vector<8x16x16xi32>
    %21 = arith.sitofp %20 : vector<8x16x16xi32> to vector<8x16x16xf32>
    %22 = arith.maximumf %16, %21 : vector<8x16x16xf32>
    %c0_12 = arith.constant 0 : index
    %c1_13 = arith.constant 1 : index
    %c1_14 = arith.constant 1 : index
    %23 = vector.load %arg3[%c0_12, %c1_13, %c1_14] : memref<8x18x18xf32, #tpu.memory_space<vmem>>, vector<8x16x16xf32>
    %cst_15 = arith.constant 0.0145124719 : f32
    %24 = vector.broadcast %cst_15 : f32 to vector<8x16x16xf32>
    %25 = arith.cmpf olt, %23, %24 : vector<8x16x16xf32>
    %26 = arith.extui %25 : vector<8x16x16xi1> to vector<8x16x16xi32>
    %27 = arith.sitofp %26 : vector<8x16x16xi32> to vector<8x16x16xf32>
    %28 = arith.maximumf %22, %27 : vector<8x16x16xf32>
    %c0_16 = arith.constant 0 : index
    %c1_17 = arith.constant 1 : index
    %c2_18 = arith.constant 2 : index
    %29 = vector.load %arg3[%c0_16, %c1_17, %c2_18] : memref<8x18x18xf32, #tpu.memory_space<vmem>>, vector<8x16x16xf32>
    %cst_19 = arith.constant 0.0145124719 : f32
    %30 = vector.broadcast %cst_19 : f32 to vector<8x16x16xf32>
    %31 = arith.cmpf olt, %29, %30 : vector<8x16x16xf32>
    %32 = arith.extui %31 : vector<8x16x16xi1> to vector<8x16x16xi32>
    %33 = arith.sitofp %32 : vector<8x16x16xi32> to vector<8x16x16xf32>
    %34 = arith.maximumf %28, %33 : vector<8x16x16xf32>
    %c0_20 = arith.constant 0 : index
    %c2_21 = arith.constant 2 : index
    %c0_22 = arith.constant 0 : index
    %35 = vector.load %arg3[%c0_20, %c2_21, %c0_22] : memref<8x18x18xf32, #tpu.memory_space<vmem>>, vector<8x16x16xf32>
    %cst_23 = arith.constant 0.0145124719 : f32
    %36 = vector.broadcast %cst_23 : f32 to vector<8x16x16xf32>
    %37 = arith.cmpf olt, %35, %36 : vector<8x16x16xf32>
    %38 = arith.extui %37 : vector<8x16x16xi1> to vector<8x16x16xi32>
    %39 = arith.sitofp %38 : vector<8x16x16xi32> to vector<8x16x16xf32>
    %40 = arith.maximumf %34, %39 : vector<8x16x16xf32>
    %c0_24 = arith.constant 0 : index
    %c2_25 = arith.constant 2 : index
    %c1_26 = arith.constant 1 : index
    %41 = vector.load %arg3[%c0_24, %c2_25, %c1_26] : memref<8x18x18xf32, #tpu.memory_space<vmem>>, vector<8x16x16xf32>
    %cst_27 = arith.constant 0.0145124719 : f32
    %42 = vector.broadcast %cst_27 : f32 to vector<8x16x16xf32>
    %43 = arith.cmpf olt, %41, %42 : vector<8x16x16xf32>
    %44 = arith.extui %43 : vector<8x16x16xi1> to vector<8x16x16xi32>
    %45 = arith.sitofp %44 : vector<8x16x16xi32> to vector<8x16x16xf32>
    %46 = arith.maximumf %40, %45 : vector<8x16x16xf32>
    %c0_28 = arith.constant 0 : index
    %c2_29 = arith.constant 2 : index
    %c2_30 = arith.constant 2 : index
    %47 = vector.load %arg3[%c0_28, %c2_29, %c2_30] : memref<8x18x18xf32, #tpu.memory_space<vmem>>, vector<8x16x16xf32>
    %cst_31 = arith.constant 0.0145124719 : f32
    %48 = vector.broadcast %cst_31 : f32 to vector<8x16x16xf32>
    %49 = arith.cmpf olt, %47, %48 : vector<8x16x16xf32>
    %50 = arith.extui %49 : vector<8x16x16xi1> to vector<8x16x16xi32>
    %51 = arith.sitofp %50 : vector<8x16x16xi32> to vector<8x16x16xf32>
    %52 = arith.maximumf %46, %51 : vector<8x16x16xf32>
    %cst_32 = arith.constant 1.000000e+00 : f32
    %53 = vector.broadcast %cst_32 : f32 to vector<8x16x16xf32>
    %54 = arith.subf %53, %52 : vector<8x16x16xf32>
    %c0_33 = arith.constant 0 : index
    %c0_34 = arith.constant 0 : index
    %55 = memref.load %arg1[%c0_33, %c0_34] : memref<1x1xf32, #tpu.memory_space<smem>>
    %cst_35 = arith.constant 2.048000e+03 : f32
    %56 = arith.divf %cst_35, %55 : f32
    %c0_36 = arith.constant 0 : index
    %c0_37 = arith.constant 0 : index
    %c0_38 = arith.constant 0 : index
    %57 = vector.load %arg2[%c0_36, %c0_37, %c0_38] : memref<8x16x16xf32, #tpu.memory_space<vmem>>, vector<8x16x16xf32>
    %58 = arith.mulf %57, %54 : vector<8x16x16xf32>
    %59 = vector.broadcast %56 : f32 to vector<8x16x16xf32>
    %60 = arith.mulf %58, %59 : vector<8x16x16xf32>
    %c0_39 = arith.constant 0 : index
    %c0_40 = arith.constant 0 : index
    %c0_41 = arith.constant 0 : index
    %61 = vector.load %arg4[%c0_39, %c0_40, %c0_41] : memref<8x16x16xf32, #tpu.memory_space<vmem>>, vector<8x16x16xf32>
    tpu.vector_store %arg4[%c0_39, %c0_40, %c0_41], %60 {strides = array<i32>} : memref<8x16x16xf32, #tpu.memory_space<vmem>>, vector<8x16x16xf32>,
    return
  }
  func.func @transform_0(%arg0: i32) -> (i32, i32) {
    %c0_i32 = arith.constant 0 : i32
    %c0_i32_0 = arith.constant 0 : i32
    %c0_i32_1 = arith.constant 0 : i32
    return %c0_i32, %c0_i32_0 : i32, i32
  }
  func.func @transform_1(%arg0: i32) -> (i32, i32, i32) {
    %c0_i32 = arith.constant 0 : i32
    %c0_i32_0 = arith.constant 0 : i32
    %c0_i32_1 = arith.constant 0 : i32
    return %arg0, %c0_i32, %c0_i32_0 : i32, i32, i32
  }
  func.func @transform_2(%arg0: i32) -> (i32, i32, i32) {
    %c0_i32 = arith.constant 0 : i32
    %c0_i32_0 = arith.constant 0 : i32
    %c0_i32_1 = arith.constant 0 : i32
    return %arg0, %c0_i32, %c0_i32_0 : i32, i32, i32
  }
  func.func @transform_3(%arg0: i32) -> (i32, i32, i32) {
    %c0_i32 = arith.constant 0 : i32
    %c0_i32_0 = arith.constant 0 : i32
    %c0_i32_1 = arith.constant 0 : i32
    return %arg0, %c0_i32, %c0_i32_0 : i32, i32, i32
  }
}

module attributes {stable_mosaic.version = 11 : i64} {
  func.func @_mask_sum_kernel(%arg0: i32, %arg1: memref<8x18x18xf32, #tpu.memory_space<vmem>>, %arg2: memref<1x1xf32, #tpu.memory_space<vmem>>) attributes {dimension_semantics = [#tpu.dimension_semantics<arbitrary>], iteration_bounds = array<i64: 1>, scalar_prefetch = 0 : i64, scratch_operands = 0 : i64, tpu.core_type = #tpu.core_type<tc>, window_params = [{transform_indices = @transform_0, window_bounds = array<i64: 8, 18, 18>}, {pipeline_mode = #tpu.pipeline_mode<synchronous>, transform_indices = @transform_1, window_bounds = array<i64: 1, 1>}]} {
    %c0_i32 = arith.constant 0 : i32
    %0 = arith.cmpi eq, %arg0, %c0_i32 : i32
    %1 = arith.extui %0 : i1 to i32
    %c0_i32_0 = arith.constant 0 : i32
    %2 = arith.cmpi ne, %1, %c0_i32_0 : i32
    scf.if %2 {
      %cst_39 = arith.constant 0.000000e+00 : f32
      %66 = vector.broadcast %cst_39 : f32 to vector<1x1xf32>
      %c0_40 = arith.constant 0 : index
      %c0_41 = arith.constant 0 : index
      %67 = vector.load %arg2[%c0_40, %c0_41] : memref<1x1xf32, #tpu.memory_space<vmem>>, vector<1x1xf32>
      tpu.vector_store %arg2[%c0_40, %c0_41], %66 {strides = array<i32>} : memref<1x1xf32, #tpu.memory_space<vmem>>, vector<1x1xf32>,
    } else {
    }
    %c0 = arith.constant 0 : index
    %c0_1 = arith.constant 0 : index
    %c0_2 = arith.constant 0 : index
    %3 = vector.load %arg1[%c0, %c0_1, %c0_2] : memref<8x18x18xf32, #tpu.memory_space<vmem>>, vector<8x16x16xf32>
    %cst = arith.constant 0.0145124719 : f32
    %4 = vector.broadcast %cst : f32 to vector<8x16x16xf32>
    %5 = arith.cmpf olt, %3, %4 : vector<8x16x16xf32>
    %6 = arith.extui %5 : vector<8x16x16xi1> to vector<8x16x16xi32>
    %7 = arith.sitofp %6 : vector<8x16x16xi32> to vector<8x16x16xf32>
    %c0_3 = arith.constant 0 : index
    %c0_4 = arith.constant 0 : index
    %c1 = arith.constant 1 : index
    %8 = vector.load %arg1[%c0_3, %c0_4, %c1] : memref<8x18x18xf32, #tpu.memory_space<vmem>>, vector<8x16x16xf32>
    %cst_5 = arith.constant 0.0145124719 : f32
    %9 = vector.broadcast %cst_5 : f32 to vector<8x16x16xf32>
    %10 = arith.cmpf olt, %8, %9 : vector<8x16x16xf32>
    %11 = arith.extui %10 : vector<8x16x16xi1> to vector<8x16x16xi32>
    %12 = arith.sitofp %11 : vector<8x16x16xi32> to vector<8x16x16xf32>
    %13 = arith.maximumf %7, %12 : vector<8x16x16xf32>
    %c0_6 = arith.constant 0 : index
    %c0_7 = arith.constant 0 : index
    %c2 = arith.constant 2 : index
    %14 = vector.load %arg1[%c0_6, %c0_7, %c2] : memref<8x18x18xf32, #tpu.memory_space<vmem>>, vector<8x16x16xf32>
    %cst_8 = arith.constant 0.0145124719 : f32
    %15 = vector.broadcast %cst_8 : f32 to vector<8x16x16xf32>
    %16 = arith.cmpf olt, %14, %15 : vector<8x16x16xf32>
    %17 = arith.extui %16 : vector<8x16x16xi1> to vector<8x16x16xi32>
    %18 = arith.sitofp %17 : vector<8x16x16xi32> to vector<8x16x16xf32>
    %19 = arith.maximumf %13, %18 : vector<8x16x16xf32>
    %c0_9 = arith.constant 0 : index
    %c1_10 = arith.constant 1 : index
    %c0_11 = arith.constant 0 : index
    %20 = vector.load %arg1[%c0_9, %c1_10, %c0_11] : memref<8x18x18xf32, #tpu.memory_space<vmem>>, vector<8x16x16xf32>
    %cst_12 = arith.constant 0.0145124719 : f32
    %21 = vector.broadcast %cst_12 : f32 to vector<8x16x16xf32>
    %22 = arith.cmpf olt, %20, %21 : vector<8x16x16xf32>
    %23 = arith.extui %22 : vector<8x16x16xi1> to vector<8x16x16xi32>
    %24 = arith.sitofp %23 : vector<8x16x16xi32> to vector<8x16x16xf32>
    %25 = arith.maximumf %19, %24 : vector<8x16x16xf32>
    %c0_13 = arith.constant 0 : index
    %c1_14 = arith.constant 1 : index
    %c1_15 = arith.constant 1 : index
    %26 = vector.load %arg1[%c0_13, %c1_14, %c1_15] : memref<8x18x18xf32, #tpu.memory_space<vmem>>, vector<8x16x16xf32>
    %cst_16 = arith.constant 0.0145124719 : f32
    %27 = vector.broadcast %cst_16 : f32 to vector<8x16x16xf32>
    %28 = arith.cmpf olt, %26, %27 : vector<8x16x16xf32>
    %29 = arith.extui %28 : vector<8x16x16xi1> to vector<8x16x16xi32>
    %30 = arith.sitofp %29 : vector<8x16x16xi32> to vector<8x16x16xf32>
    %31 = arith.maximumf %25, %30 : vector<8x16x16xf32>
    %c0_17 = arith.constant 0 : index
    %c1_18 = arith.constant 1 : index
    %c2_19 = arith.constant 2 : index
    %32 = vector.load %arg1[%c0_17, %c1_18, %c2_19] : memref<8x18x18xf32, #tpu.memory_space<vmem>>, vector<8x16x16xf32>
    %cst_20 = arith.constant 0.0145124719 : f32
    %33 = vector.broadcast %cst_20 : f32 to vector<8x16x16xf32>
    %34 = arith.cmpf olt, %32, %33 : vector<8x16x16xf32>
    %35 = arith.extui %34 : vector<8x16x16xi1> to vector<8x16x16xi32>
    %36 = arith.sitofp %35 : vector<8x16x16xi32> to vector<8x16x16xf32>
    %37 = arith.maximumf %31, %36 : vector<8x16x16xf32>
    %c0_21 = arith.constant 0 : index
    %c2_22 = arith.constant 2 : index
    %c0_23 = arith.constant 0 : index
    %38 = vector.load %arg1[%c0_21, %c2_22, %c0_23] : memref<8x18x18xf32, #tpu.memory_space<vmem>>, vector<8x16x16xf32>
    %cst_24 = arith.constant 0.0145124719 : f32
    %39 = vector.broadcast %cst_24 : f32 to vector<8x16x16xf32>
    %40 = arith.cmpf olt, %38, %39 : vector<8x16x16xf32>
    %41 = arith.extui %40 : vector<8x16x16xi1> to vector<8x16x16xi32>
    %42 = arith.sitofp %41 : vector<8x16x16xi32> to vector<8x16x16xf32>
    %43 = arith.maximumf %37, %42 : vector<8x16x16xf32>
    %c0_25 = arith.constant 0 : index
    %c2_26 = arith.constant 2 : index
    %c1_27 = arith.constant 1 : index
    %44 = vector.load %arg1[%c0_25, %c2_26, %c1_27] : memref<8x18x18xf32, #tpu.memory_space<vmem>>, vector<8x16x16xf32>
    %cst_28 = arith.constant 0.0145124719 : f32
    %45 = vector.broadcast %cst_28 : f32 to vector<8x16x16xf32>
    %46 = arith.cmpf olt, %44, %45 : vector<8x16x16xf32>
    %47 = arith.extui %46 : vector<8x16x16xi1> to vector<8x16x16xi32>
    %48 = arith.sitofp %47 : vector<8x16x16xi32> to vector<8x16x16xf32>
    %49 = arith.maximumf %43, %48 : vector<8x16x16xf32>
    %c0_29 = arith.constant 0 : index
    %c2_30 = arith.constant 2 : index
    %c2_31 = arith.constant 2 : index
    %50 = vector.load %arg1[%c0_29, %c2_30, %c2_31] : memref<8x18x18xf32, #tpu.memory_space<vmem>>, vector<8x16x16xf32>
    %cst_32 = arith.constant 0.0145124719 : f32
    %51 = vector.broadcast %cst_32 : f32 to vector<8x16x16xf32>
    %52 = arith.cmpf olt, %50, %51 : vector<8x16x16xf32>
    %53 = arith.extui %52 : vector<8x16x16xi1> to vector<8x16x16xi32>
    %54 = arith.sitofp %53 : vector<8x16x16xi32> to vector<8x16x16xf32>
    %55 = arith.maximumf %49, %54 : vector<8x16x16xf32>
    %cst_33 = arith.constant 1.000000e+00 : f32
    %56 = vector.broadcast %cst_33 : f32 to vector<8x16x16xf32>
    %57 = arith.subf %56, %55 : vector<8x16x16xf32>
    %c0_34 = arith.constant 0 : index
    %c0_35 = arith.constant 0 : index
    %58 = vector.load %arg2[%c0_34, %c0_35] : memref<1x1xf32, #tpu.memory_space<vmem>>, vector<1x1xf32>
    %59 = vector.shape_cast %57 : vector<8x16x16xf32> to vector<1x8x16x16xf32>
    %cst_36 = arith.constant dense<0.000000e+00> : vector<1xf32>
    %60 = vector.multi_reduction <add>, %59, %cst_36 [1, 2, 3] : vector<1x8x16x16xf32> to vector<1xf32>
    %61 = vector.shape_cast %60 : vector<1xf32> to vector<1x1x1x1xf32>
    %62 = vector.extract %61[0, 0, 0, 0] : f32 from vector<1x1x1x1xf32>
    %63 = vector.broadcast %62 : f32 to vector<1x1xf32>
    %64 = arith.addf %58, %63 : vector<1x1xf32>
    %c0_37 = arith.constant 0 : index
    %c0_38 = arith.constant 0 : index
    %65 = vector.load %arg2[%c0_37, %c0_38] : memref<1x1xf32, #tpu.memory_space<vmem>>, vector<1x1xf32>
    tpu.vector_store %arg2[%c0_37, %c0_38], %64 {strides = array<i32>} : memref<1x1xf32, #tpu.memory_space<vmem>>, vector<1x1xf32>,
    return
  }
  func.func @transform_0(%arg0: i32) -> (i32, i32, i32) {
    %c0_i32 = arith.constant 0 : i32
    %c0_i32_0 = arith.constant 0 : i32
    %c0_i32_1 = arith.constant 0 : i32
    return %arg0, %c0_i32, %c0_i32_0 : i32, i32, i32
  }
  func.func @transform_1(%arg0: i32) -> (i32, i32) {
    %c0_i32 = arith.constant 0 : i32
    %c0_i32_0 = arith.constant 0 : i32
    %c0_i32_1 = arith.constant 0 : i32
    return %c0_i32, %c0_i32_0 : i32, i32
  }
}

</mosaic_0001>

<llo_original>
// kernel: dropblock.3
$region0: #{dropblock.3}
  #allocation0 [shape = 'u32[]', space=smem, size = 0x4, offset = 0x4, fixed_abs, tag = 'smem constant byte address 0x4 - core index']
  #allocation1 [shape = 'u32[144,128]{1,0:T(1,128)}', space=vmem, size = 0x12000, scoped, tag = 'internal scratch']
  #allocation2 [shape = 'f32[1,1]{1,0:T(1,128)S(6)}', space=smem, size = 0x200, scoped, tag = 'scoped memory for dropblock.3']
  %s0 = inlined_call_operand.<no memory space> [shape: f32[1,1], index: 0, kind: input, shape index: {}]
  %s1 = inlined_call_operand.vmem [shape: f32[8,16,16], index: 1, kind: input, shape index: {}]
  %s2 = inlined_call_operand.vmem [shape: f32[8,18,18], index: 2, kind: input, shape index: {}]
  %s3 = inlined_call_operand.hbm [shape: f32[8,16,16], index: 3, kind: output, shape index: {}]
  %s4 = sld [smem:[#allocation0]]
  $region22: #{dropblock.3} parent=0
    _
  %s6 = ssub.s32 1, %s4
  %s7 = scalar_select 0, %s6, %s4
  %8 = sst [smem:[#allocation2]] %s0
  $region1: #{dropblock.3} parent=0
    #allocation3 [shape = 'u8[65536]{0}', space=vmem, size = 0x10000, scoped, tag = 'output window, operand 0, single buffered']
    #allocation4 [shape = 's32[1]{0}', space=sflag, size = 0x4, scoped, tag = 'scoped memory for dropblock.3']
    %9 = vsyncpa [#allocation4], 0
    // Predicated region
    $region2: #{dropblock.3} parent=1 // pred_check
      _
    $region3: #{dropblock.3} parent=1 // pred_check_branch
      %11 = sbr.rel (0) target = $region5
    $region4: #{dropblock.3} parent=1 // pred_region
      _
    $region5: #{dropblock.3} parent=1 // pred_fallthru
      _
    // Predicated region
    $region6: #{dropblock.3} parent=1 // pred_check
      _
    $region7: #{dropblock.3} parent=1 // pred_check_branch
      %13 = sbr.rel (0) target = $region9
    $region8: #{dropblock.3} parent=1 // pred_region
      _
    $region9: #{dropblock.3} parent=1 // pred_fallthru
      _
    // Predicated region
    $region10: #{dropblock.3} parent=1 // pred_check
      _
    $region11: #{dropblock.3} parent=1 // pred_check_branch
      %15 = sbr.rel (0) target = $region13
    $region12: #{dropblock.3} parent=1 // pred_region
      _
    $region13: #{dropblock.3} parent=1 // pred_fallthru
      _
    %v16 = vld [vmem:[%s2] sm:$0xff]
    %v17 = vld [vmem:[%s2 + $0x8] sm:$0xff]
    %v18 = vld [vmem:[%s2 + $0x18] sm:$0xff]
    %v19 = vld [vmem:[%s2 + $0x20] sm:$0xff]
    %v20 = vld [vmem:[%s2 + $0x30] sm:$0xff]
    %v21 = vld [vmem:[%s2 + $0x38] sm:$0xff]
    %v22 = vld [vmem:[%s2 + $0x48] sm:$0xff]
    %v23 = vld [vmem:[%s2 + $0x50] sm:$0xff]
    %v24 = vld [vmem:[%s2 + $0x60] sm:$0xff]
    %v25 = vld [vmem:[%s2 + $0x68] sm:$0xff]
    %v26 = vld [vmem:[%s2 + $0x78] sm:$0xff]
    %v27 = vld [vmem:[%s2 + $0x80] sm:$0xff]
    %v28 = vld [vmem:[%s2 + $0x90] sm:$0xff]
    %v29 = vld [vmem:[%s2 + $0x98] sm:$0xff]
    %v30 = vld [vmem:[%s2 + $0xa8] sm:$0xff]
    %v31 = vld [vmem:[%s2 + $0xb0] sm:$0xff]
    %vm32 = vcmp.lt.f32.partialorder %v16, 0.014512472
    %vm33 = vcmp.lt.f32.partialorder %v17, 0.014512472
    %vm34 = vcmp.lt.f32.partialorder %v18, 0.014512472
    %vm35 = vcmp.lt.f32.partialorder %v19, 0.014512472
    %vm36 = vcmp.lt.f32.partialorder %v20, 0.014512472
    %vm37 = vcmp.lt.f32.partialorder %v21, 0.014512472
    %vm38 = vcmp.lt.f32.partialorder %v22, 0.014512472
    %vm39 = vcmp.lt.f32.partialorder %v23, 0.014512472
    %vm40 = vcmp.lt.f32.partialorder %v24, 0.014512472
    %vm41 = vcmp.lt.f32.partialorder %v25, 0.014512472
    %vm42 = vcmp.lt.f32.partialorder %v26, 0.014512472
    %vm43 = vcmp.lt.f32.partialorder %v27, 0.014512472
    %vm44 = vcmp.lt.f32.partialorder %v28, 0.014512472
    %vm45 = vcmp.lt.f32.partialorder %v29, 0.014512472
    %vm46 = vcmp.lt.f32.partialorder %v30, 0.014512472
    %vm47 = vcmp.lt.f32.partialorder %v31, 0.014512472
    %v48 = vsel %vm32, 1, 0
    %v49 = vsel %vm33, 1, 0
    %v50 = vsel %vm34, 1, 0
    %v51 = vsel %vm35, 1, 0
    %v52 = vsel %vm36, 1, 0
    %v53 = vsel %vm37, 1, 0
    %v54 = vsel %vm38, 1, 0
    %v55 = vsel %vm39, 1, 0
    %v56 = vsel %vm40, 1, 0
    %v57 = vsel %vm41, 1, 0
    %v58 = vsel %vm42, 1, 0
    %v59 = vsel %vm43, 1, 0
    %v60 = vsel %vm44, 1, 0
    %v61 = vsel %vm45, 1, 0
    %v62 = vsel %vm46, 1, 0
    %v63 = vsel %vm47, 1, 0
    %v64 = vcvt.s32.f32 %v48
    %v65 = vcvt.s32.f32 %v49
    %v66 = vcvt.s32.f32 %v50
    %v67 = vcvt.s32.f32 %v51
    %v68 = vcvt.s32.f32 %v52
    %v69 = vcvt.s32.f32 %v53
    %v70 = vcvt.s32.f32 %v54
    %v71 = vcvt.s32.f32 %v55
    %v72 = vcvt.s32.f32 %v56
    %v73 = vcvt.s32.f32 %v57
    %v74 = vcvt.s32.f32 %v58
    %v75 = vcvt.s32.f32 %v59
    %v76 = vcvt.s32.f32 %v60
    %v77 = vcvt.s32.f32 %v61
    %v78 = vcvt.s32.f32 %v62
    %v79 = vcvt.s32.f32 %v63
    %96 = vrot.lane.b32.xlu0 %v64, 127
    %v97 = vpop.permute.xlu0 %96
    %98 = vrot.lane.b32.xlu0 %v65, 127
    %v99 = vpop.permute.xlu0 %98
    %100 = vrot.lane.b32.xlu0 %v66, 127
    %v101 = vpop.permute.xlu0 %100
    %102 = vrot.lane.b32.xlu0 %v67, 127
    %v103 = vpop.permute.xlu0 %102
    %104 = vrot.lane.b32.xlu0 %v68, 127
    %v105 = vpop.permute.xlu0 %104
    %106 = vrot.lane.b32.xlu0 %v69, 127
    %v107 = vpop.permute.xlu0 %106
    %108 = vrot.lane.b32.xlu0 %v70, 127
    %v109 = vpop.permute.xlu0 %108
    %110 = vrot.lane.b32.xlu0 %v71, 127
    %v111 = vpop.permute.xlu0 %110
    %112 = vrot.lane.b32.xlu0 %v72, 127
    %v113 = vpop.permute.xlu0 %112
    %114 = vrot.lane.b32.xlu0 %v73, 127
    %v115 = vpop.permute.xlu0 %114
    %116 = vrot.lane.b32.xlu0 %v74, 127
    %v117 = vpop.permute.xlu0 %116
    %118 = vrot.lane.b32.xlu0 %v75, 127
    %v119 = vpop.permute.xlu0 %118
    %120 = vrot.lane.b32.xlu0 %v76, 127
    %v121 = vpop.permute.xlu0 %120
    %122 = vrot.lane.b32.xlu0 %v77, 127
    %v123 = vpop.permute.xlu0 %122
    %124 = vrot.lane.b32.xlu0 %v78, 127
    %v125 = vpop.permute.xlu0 %124
    %126 = vrot.lane.b32.xlu0 %v79, 127
    %v127 = vpop.permute.xlu0 %126
    %v144 = vmax.f32 %v64, %v97
    %v145 = vmax.f32 %v65, %v99
    %v146 = vmax.f32 %v66, %v101
    %v147 = vmax.f32 %v67, %v103
    %v148 = vmax.f32 %v68, %v105
    %v149 = vmax.f32 %v69, %v107
    %v150 = vmax.f32 %v70, %v109
    %v151 = vmax.f32 %v71, %v111
    %v152 = vmax.f32 %v72, %v113
    %v153 = vmax.f32 %v73, %v115
    %v154 = vmax.f32 %v74, %v117
    %v155 = vmax.f32 %v75, %v119
    %v156 = vmax.f32 %v76, %v121
    %v157 = vmax.f32 %v77, %v123
    %v158 = vmax.f32 %v78, %v125
    %v159 = vmax.f32 %v79, %v127
    %160 = vrot.lane.b32.xlu0 %v64, 126
    %v161 = vpop.permute.xlu0 %160
    %162 = vrot.lane.b32.xlu0 %v65, 126
    %v163 = vpop.permute.xlu0 %162
    %164 = vrot.lane.b32.xlu0 %v66, 126
    %v165 = vpop.permute.xlu0 %164
    %166 = vrot.lane.b32.xlu0 %v67, 126
    %v167 = vpop.permute.xlu0 %166
    %168 = vrot.lane.b32.xlu0 %v68, 126
    %v169 = vpop.permute.xlu0 %168
    %170 = vrot.lane.b32.xlu0 %v69, 126
    %v171 = vpop.permute.xlu0 %170
    %172 = vrot.lane.b32.xlu0 %v70, 126
    %v173 = vpop.permute.xlu0 %172
    %174 = vrot.lane.b32.xlu0 %v71, 126
    %v175 = vpop.permute.xlu0 %174
    %176 = vrot.lane.b32.xlu0 %v72, 126
    %v177 = vpop.permute.xlu0 %176
    %178 = vrot.lane.b32.xlu0 %v73, 126
    %v179 = vpop.permute.xlu0 %178
    %180 = vrot.lane.b32.xlu0 %v74, 126
    %v181 = vpop.permute.xlu0 %180
    %182 = vrot.lane.b32.xlu0 %v75, 126
    %v183 = vpop.permute.xlu0 %182
    %184 = vrot.lane.b32.xlu0 %v76, 126
    %v185 = vpop.permute.xlu0 %184
    %186 = vrot.lane.b32.xlu0 %v77, 126
    %v187 = vpop.permute.xlu0 %186
    %188 = vrot.lane.b32.xlu0 %v78, 126
    %v189 = vpop.permute.xlu0 %188
    %190 = vrot.lane.b32.xlu0 %v79, 126
    %v191 = vpop.permute.xlu0 %190
    %v208 = vmax.f32 %v144, %v161
    %v209 = vmax.f32 %v145, %v163
    %v210 = vmax.f32 %v146, %v165
    %v211 = vmax.f32 %v147, %v167
    %v212 = vmax.f32 %v148, %v169
    %v213 = vmax.f32 %v149, %v171
    %v214 = vmax.f32 %v150, %v173
    %v215 = vmax.f32 %v151, %v175
    %v216 = vmax.f32 %v152, %v177
    %v217 = vmax.f32 %v153, %v179
    %v218 = vmax.f32 %v154, %v181
    %v219 = vmax.f32 %v155, %v183
    %v220 = vmax.f32 %v156, %v185
    %v221 = vmax.f32 %v157, %v187
    %v222 = vmax.f32 %v158, %v189
    %v223 = vmax.f32 %v159, %v191
    %v224 = vld [vmem:[%s2 + $0x1] sm:$0xff]
    %v225 = vld [vmem:[%s2 + $0x9] sm:$0xff]
    %v226 = vld [vmem:[%s2 + $0x19] sm:$0xff]
    %v227 = vld [vmem:[%s2 + $0x21] sm:$0xff]
    %v228 = vld [vmem:[%s2 + $0x31] sm:$0xff]
    %v229 = vld [vmem:[%s2 + $0x39] sm:$0xff]
    %v230 = vld [vmem:[%s2 + $0x49] sm:$0xff]
    %v231 = vld [vmem:[%s2 + $0x51] sm:$0xff]
    %v232 = vld [vmem:[%s2 + $0x61] sm:$0xff]
    %v233 = vld [vmem:[%s2 + $0x69] sm:$0xff]
    %v234 = vld [vmem:[%s2 + $0x79] sm:$0xff]
    %v235 = vld [vmem:[%s2 + $0x81] sm:$0xff]
    %v236 = vld [vmem:[%s2 + $0x91] sm:$0xff]
    %v237 = vld [vmem:[%s2 + $0x99] sm:$0xff]
    %v238 = vld [vmem:[%s2 + $0xa9] sm:$0xff]
    %v239 = vld [vmem:[%s2 + $0xb1] sm:$0xff]
    %vm240 = vcmp.lt.f32.partialorder %v224, 0.014512472
    %vm241 = vcmp.lt.f32.partialorder %v225, 0.014512472
    %vm242 = vcmp.lt.f32.partialorder %v226, 0.014512472
    %vm243 = vcmp.lt.f32.partialorder %v227, 0.014512472
    %vm244 = vcmp.lt.f32.partialorder %v228, 0.014512472
    %vm245 = vcmp.lt.f32.partialorder %v229, 0.014512472
    %vm246 = vcmp.lt.f32.partialorder %v230, 0.014512472
    %vm247 = vcmp.lt.f32.partialorder %v231, 0.014512472
    %vm248 = vcmp.lt.f32.partialorder %v232, 0.014512472
    %vm249 = vcmp.lt.f32.partialorder %v233, 0.014512472
    %vm250 = vcmp.lt.f32.partialorder %v234, 0.014512472
    %vm251 = vcmp.lt.f32.partialorder %v235, 0.014512472
    %vm252 = vcmp.lt.f32.partialorder %v236, 0.014512472
    %vm253 = vcmp.lt.f32.partialorder %v237, 0.014512472
    %vm254 = vcmp.lt.f32.partialorder %v238, 0.014512472
    %vm255 = vcmp.lt.f32.partialorder %v239, 0.014512472
    %v256 = vsel %vm240, 1, 0
    %v257 = vsel %vm241, 1, 0
    %v258 = vsel %vm242, 1, 0
    %v259 = vsel %vm243, 1, 0
    %v260 = vsel %vm244, 1, 0
    %v261 = vsel %vm245, 1, 0
    %v262 = vsel %vm246, 1, 0
    %v263 = vsel %vm247, 1, 0
    %v264 = vsel %vm248, 1, 0
    %v265 = vsel %vm249, 1, 0
    %v266 = vsel %vm250, 1, 0
    %v267 = vsel %vm251, 1, 0
    %v268 = vsel %vm252, 1, 0
    %v269 = vsel %vm253, 1, 0
    %v270 = vsel %vm254, 1, 0
    %v271 = vsel %vm255, 1, 0
    %v272 = vcvt.s32.f32 %v256
    %v273 = vcvt.s32.f32 %v257
    %v274 = vcvt.s32.f32 %v258
    %v275 = vcvt.s32.f32 %v259
    %v276 = vcvt.s32.f32 %v260
    %v277 = vcvt.s32.f32 %v261
    %v278 = vcvt.s32.f32 %v262
    %v279 = vcvt.s32.f32 %v263
    %v280 = vcvt.s32.f32 %v264
    %v281 = vcvt.s32.f32 %v265
    %v282 = vcvt.s32.f32 %v266
    %v283 = vcvt.s32.f32 %v267
    %v284 = vcvt.s32.f32 %v268
    %v285 = vcvt.s32.f32 %v269
    %v286 = vcvt.s32.f32 %v270
    %v287 = vcvt.s32.f32 %v271
    %v288 = vmax.f32 %v208, %v272
    %v289 = vmax.f32 %v209, %v273
    %v290 = vmax.f32 %v210, %v274
    %v291 = vmax.f32 %v211, %v275
    %v292 = vmax.f32 %v212, %v276
    %v293 = vmax.f32 %v213, %v277
    %v294 = vmax.f32 %v214, %v278
    %v295 = vmax.f32 %v215, %v279
    %v296 = vmax.f32 %v216, %v280
    %v297 = vmax.f32 %v217, %v281
    %v298 = vmax.f32 %v218, %v282
    %v299 = vmax.f32 %v219, %v283
    %v300 = vmax.f32 %v220, %v284
    %v301 = vmax.f32 %v221, %v285
    %v302 = vmax.f32 %v222, %v286
    %v303 = vmax.f32 %v223, %v287
    %320 = vrot.lane.b32.xlu0 %v272, 127
    %v321 = vpop.permute.xlu0 %320
    %322 = vrot.lane.b32.xlu0 %v273, 127
    %v323 = vpop.permute.xlu0 %322
    %324 = vrot.lane.b32.xlu0 %v274, 127
    %v325 = vpop.permute.xlu0 %324
    %326 = vrot.lane.b32.xlu0 %v275, 127
    %v327 = vpop.permute.xlu0 %326
    %328 = vrot.lane.b32.xlu0 %v276, 127
    %v329 = vpop.permute.xlu0 %328
    %330 = vrot.lane.b32.xlu0 %v277, 127
    %v331 = vpop.permute.xlu0 %330
    %332 = vrot.lane.b32.xlu0 %v278, 127
    %v333 = vpop.permute.xlu0 %332
    %334 = vrot.lane.b32.xlu0 %v279, 127
    %v335 = vpop.permute.xlu0 %334
    %336 = vrot.lane.b32.xlu0 %v280, 127
    %v337 = vpop.permute.xlu0 %336
    %338 = vrot.lane.b32.xlu0 %v281, 127
    %v339 = vpop.permute.xlu0 %338
    %340 = vrot.lane.b32.xlu0 %v282, 127
    %v341 = vpop.permute.xlu0 %340
    %342 = vrot.lane.b32.xlu0 %v283, 127
    %v343 = vpop.permute.xlu0 %342
    %344 = vrot.lane.b32.xlu0 %v284, 127
    %v345 = vpop.permute.xlu0 %344
    %346 = vrot.lane.b32.xlu0 %v285, 127
    %v347 = vpop.permute.xlu0 %346
    %348 = vrot.lane.b32.xlu0 %v286, 127
    %v349 = vpop.permute.xlu0 %348
    %350 = vrot.lane.b32.xlu0 %v287, 127
    %v351 = vpop.permute.xlu0 %350
    %v368 = vmax.f32 %v288, %v321
    %v369 = vmax.f32 %v289, %v323
    %v370 = vmax.f32 %v290, %v325
    %v371 = vmax.f32 %v291, %v327
    %v372 = vmax.f32 %v292, %v329
    %v373 = vmax.f32 %v293, %v331
    %v374 = vmax.f32 %v294, %v333
    %v375 = vmax.f32 %v295, %v335
    %v376 = vmax.f32 %v296, %v337
    %v377 = vmax.f32 %v297, %v339
    %v378 = vmax.f32 %v298, %v341
    %v379 = vmax.f32 %v299, %v343
    %v380 = vmax.f32 %v300, %v345
    %v381 = vmax.f32 %v301, %v347
    %v382 = vmax.f32 %v302, %v349
    %v383 = vmax.f32 %v303, %v351
    %384 = vrot.lane.b32.xlu0 %v272, 126
    %v385 = vpop.permute.xlu0 %384
    %386 = vrot.lane.b32.xlu0 %v273, 126
    %v387 = vpop.permute.xlu0 %386
    %388 = vrot.lane.b32.xlu0 %v274, 126
    %v389 = vpop.permute.xlu0 %388
    %390 = vrot.lane.b32.xlu0 %v275, 126
    %v391 = vpop.permute.xlu0 %390
    %392 = vrot.lane.b32.xlu0 %v276, 126
    %v393 = vpop.permute.xlu0 %392
    %394 = vrot.lane.b32.xlu0 %v277, 126
    %v395 = vpop.permute.xlu0 %394
    %396 = vrot.lane.b32.xlu0 %v278, 126
    %v397 = vpop.permute.xlu0 %396
    %398 = vrot.lane.b32.xlu0 %v279, 126
    %v399 = vpop.permute.xlu0 %398
    %400 = vrot.lane.b32.xlu0 %v280, 126
    %v401 = vpop.permute.xlu0 %400
    %402 = vrot.lane.b32.xlu0 %v281, 126
    %v403 = vpop.permute.xlu0 %402
    %404 = vrot.lane.b32.xlu0 %v282, 126
    %v405 = vpop.permute.xlu0 %404
    %406 = vrot.lane.b32.xlu0 %v283, 126
    %v407 = vpop.permute.xlu0 %406
    %408 = vrot.lane.b32.xlu0 %v284, 126
    %v409 = vpop.permute.xlu0 %408
    %410 = vrot.lane.b32.xlu0 %v285, 126
    %v411 = vpop.permute.xlu0 %410
    %412 = vrot.lane.b32.xlu0 %v286, 126
    %v413 = vpop.permute.xlu0 %412
    %414 = vrot.lane.b32.xlu0 %v287, 126
    %v415 = vpop.permute.xlu0 %414
    %v432 = vmax.f32 %v368, %v385
    %v433 = vmax.f32 %v369, %v387
    %v434 = vmax.f32 %v370, %v389
    %v435 = vmax.f32 %v371, %v391
    %v436 = vmax.f32 %v372, %v393
    %v437 = vmax.f32 %v373, %v395
    %v438 = vmax.f32 %v374, %v397
    %v439 = vmax.f32 %v375, %v399
    %v440 = vmax.f32 %v376, %v401
    %v441 = vmax.f32 %v377, %v403
    %v442 = vmax.f32 %v378, %v405
    %v443 = vmax.f32 %v379, %v407
    %v444 = vmax.f32 %v380, %v409
    %v445 = vmax.f32 %v381, %v411
    %v446 = vmax.f32 %v382, %v413
    %v447 = vmax.f32 %v383, %v415
    %v448 = vld [vmem:[%s2 + $0x2] sm:$0xff]
    %v449 = vld [vmem:[%s2 + $0xa] sm:$0xff]
    %v450 = vld [vmem:[%s2 + $0x1a] sm:$0xff]
    %v451 = vld [vmem:[%s2 + $0x22] sm:$0xff]
    %v452 = vld [vmem:[%s2 + $0x32] sm:$0xff]
    %v453 = vld [vmem:[%s2 + $0x3a] sm:$0xff]
    %v454 = vld [vmem:[%s2 + $0x4a] sm:$0xff]
    %v455 = vld [vmem:[%s2 + $0x52] sm:$0xff]
    %v456 = vld [vmem:[%s2 + $0x62] sm:$0xff]
    %v457 = vld [vmem:[%s2 + $0x6a] sm:$0xff]
    %v458 = vld [vmem:[%s2 + $0x7a] sm:$0xff]
    %v459 = vld [vmem:[%s2 + $0x82] sm:$0xff]
    %v460 = vld [vmem:[%s2 + $0x92] sm:$0xff]
    %v461 = vld [vmem:[%s2 + $0x9a] sm:$0xff]
    %v462 = vld [vmem:[%s2 + $0xaa] sm:$0xff]
    %v463 = vld [vmem:[%s2 + $0xb2] sm:$0xff]
    %vm464 = vcmp.lt.f32.partialorder %v448, 0.014512472
    %vm465 = vcmp.lt.f32.partialorder %v449, 0.014512472
    %vm466 = vcmp.lt.f32.partialorder %v450, 0.014512472
    %vm467 = vcmp.lt.f32.partialorder %v451, 0.014512472
    %vm468 = vcmp.lt.f32.partialorder %v452, 0.014512472
    %vm469 = vcmp.lt.f32.partialorder %v453, 0.014512472
    %vm470 = vcmp.lt.f32.partialorder %v454, 0.014512472
    %vm471 = vcmp.lt.f32.partialorder %v455, 0.014512472
    %vm472 = vcmp.lt.f32.partialorder %v456, 0.014512472
    %vm473 = vcmp.lt.f32.partialorder %v457, 0.014512472
    %vm474 = vcmp.lt.f32.partialorder %v458, 0.014512472
    %vm475 = vcmp.lt.f32.partialorder %v459, 0.014512472
    %vm476 = vcmp.lt.f32.partialorder %v460, 0.014512472
    %vm477 = vcmp.lt.f32.partialorder %v461, 0.014512472
    %vm478 = vcmp.lt.f32.partialorder %v462, 0.014512472
    %vm479 = vcmp.lt.f32.partialorder %v463, 0.014512472
    %v480 = vsel %vm464, 1, 0
    %v481 = vsel %vm465, 1, 0
    %v482 = vsel %vm466, 1, 0
    %v483 = vsel %vm467, 1, 0
    %v484 = vsel %vm468, 1, 0
    %v485 = vsel %vm469, 1, 0
    %v486 = vsel %vm470, 1, 0
    %v487 = vsel %vm471, 1, 0
    %v488 = vsel %vm472, 1, 0
    %v489 = vsel %vm473, 1, 0
    %v490 = vsel %vm474, 1, 0
    %v491 = vsel %vm475, 1, 0
    %v492 = vsel %vm476, 1, 0
    %v493 = vsel %vm477, 1, 0
    %v494 = vsel %vm478, 1, 0
    %v495 = vsel %vm479, 1, 0
    %v496 = vcvt.s32.f32 %v480
    %v497 = vcvt.s32.f32 %v481
    %v498 = vcvt.s32.f32 %v482
    %v499 = vcvt.s32.f32 %v483
    %v500 = vcvt.s32.f32 %v484
    %v501 = vcvt.s32.f32 %v485
    %v502 = vcvt.s32.f32 %v486
    %v503 = vcvt.s32.f32 %v487
    %v504 = vcvt.s32.f32 %v488
    %v505 = vcvt.s32.f32 %v489
    %v506 = vcvt.s32.f32 %v490
    %v507 = vcvt.s32.f32 %v491
    %v508 = vcvt.s32.f32 %v492
    %v509 = vcvt.s32.f32 %v493
    %v510 = vcvt.s32.f32 %v494
    %v511 = vcvt.s32.f32 %v495
    %v512 = vmax.f32 %v432, %v496
    %v513 = vmax.f32 %v433, %v497
    %v514 = vmax.f32 %v434, %v498
    %v515 = vmax.f32 %v435, %v499
    %v516 = vmax.f32 %v436, %v500
    %v517 = vmax.f32 %v437, %v501
    %v518 = vmax.f32 %v438, %v502
    %v519 = vmax.f32 %v439, %v503
    %v520 = vmax.f32 %v440, %v504
    %v521 = vmax.f32 %v441, %v505
    %v522 = vmax.f32 %v442, %v506
    %v523 = vmax.f32 %v443, %v507
    %v524 = vmax.f32 %v444, %v508
    %v525 = vmax.f32 %v445, %v509
    %v526 = vmax.f32 %v446, %v510
    %v527 = vmax.f32 %v447, %v511
    %544 = vrot.lane.b32.xlu0 %v496, 127
    %v545 = vpop.permute.xlu0 %544
    %546 = vrot.lane.b32.xlu0 %v497, 127
    %v547 = vpop.permute.xlu0 %546
    %548 = vrot.lane.b32.xlu0 %v498, 127
    %v549 = vpop.permute.xlu0 %548
    %550 = vrot.lane.b32.xlu0 %v499, 127
    %v551 = vpop.permute.xlu0 %550
    %552 = vrot.lane.b32.xlu0 %v500, 127
    %v553 = vpop.permute.xlu0 %552
    %554 = vrot.lane.b32.xlu0 %v501, 127
    %v555 = vpop.permute.xlu0 %554
    %556 = vrot.lane.b32.xlu0 %v502, 127
    %v557 = vpop.permute.xlu0 %556
    %558 = vrot.lane.b32.xlu0 %v503, 127
    %v559 = vpop.permute.xlu0 %558
    %560 = vrot.lane.b32.xlu0 %v504, 127
    %v561 = vpop.permute.xlu0 %560
    %562 = vrot.lane.b32.xlu0 %v505, 127
    %v563 = vpop.permute.xlu0 %562
    %564 = vrot.lane.b32.xlu0 %v506, 127
    %v565 = vpop.permute.xlu0 %564
    %566 = vrot.lane.b32.xlu0 %v507, 127
    %v567 = vpop.permute.xlu0 %566
    %568 = vrot.lane.b32.xlu0 %v508, 127
    %v569 = vpop.permute.xlu0 %568
    %570 = vrot.lane.b32.xlu0 %v509, 127
    %v571 = vpop.permute.xlu0 %570
    %572 = vrot.lane.b32.xlu0 %v510, 127
    %v573 = vpop.permute.xlu0 %572
    %574 = vrot.lane.b32.xlu0 %v511, 127
    %v575 = vpop.permute.xlu0 %574
    %v592 = vmax.f32 %v512, %v545
    %v593 = vmax.f32 %v513, %v547
    %v594 = vmax.f32 %v514, %v549
    %v595 = vmax.f32 %v515, %v551
    %v596 = vmax.f32 %v516, %v553
    %v597 = vmax.f32 %v517, %v555
    %v598 = vmax.f32 %v518, %v557
    %v599 = vmax.f32 %v519, %v559
    %v600 = vmax.f32 %v520, %v561
    %v601 = vmax.f32 %v521, %v563
    %v602 = vmax.f32 %v522, %v565
    %v603 = vmax.f32 %v523, %v567
    %v604 = vmax.f32 %v524, %v569
    %v605 = vmax.f32 %v525, %v571
    %v606 = vmax.f32 %v526, %v573
    %v607 = vmax.f32 %v527, %v575
    %608 = vrot.lane.b32.xlu0 %v496, 126
    %v609 = vpop.permute.xlu0 %608
    %610 = vrot.lane.b32.xlu0 %v497, 126
    %v611 = vpop.permute.xlu0 %610
    %612 = vrot.lane.b32.xlu0 %v498, 126
    %v613 = vpop.permute.xlu0 %612
    %614 = vrot.lane.b32.xlu0 %v499, 126
    %v615 = vpop.permute.xlu0 %614
    %616 = vrot.lane.b32.xlu0 %v500, 126
    %v617 = vpop.permute.xlu0 %616
    %618 = vrot.lane.b32.xlu0 %v501, 126
    %v619 = vpop.permute.xlu0 %618
    %620 = vrot.lane.b32.xlu0 %v502, 126
    %v621 = vpop.permute.xlu0 %620
    %622 = vrot.lane.b32.xlu0 %v503, 126
    %v623 = vpop.permute.xlu0 %622
    %624 = vrot.lane.b32.xlu0 %v504, 126
    %v625 = vpop.permute.xlu0 %624
    %626 = vrot.lane.b32.xlu0 %v505, 126
    %v627 = vpop.permute.xlu0 %626
    %628 = vrot.lane.b32.xlu0 %v506, 126
    %v629 = vpop.permute.xlu0 %628
    %630 = vrot.lane.b32.xlu0 %v507, 126
    %v631 = vpop.permute.xlu0 %630
    %632 = vrot.lane.b32.xlu0 %v508, 126
    %v633 = vpop.permute.xlu0 %632
    %634 = vrot.lane.b32.xlu0 %v509, 126
    %v635 = vpop.permute.xlu0 %634
    %636 = vrot.lane.b32.xlu0 %v510, 126
    %v637 = vpop.permute.xlu0 %636
    %638 = vrot.lane.b32.xlu0 %v511, 126
    %v639 = vpop.permute.xlu0 %638
    %v656 = vmax.f32 %v592, %v609
    %v657 = vmax.f32 %v593, %v611
    %v658 = vmax.f32 %v594, %v613
    %v659 = vmax.f32 %v595, %v615
    %v660 = vmax.f32 %v596, %v617
    %v661 = vmax.f32 %v597, %v619
    %v662 = vmax.f32 %v598, %v621
    %v663 = vmax.f32 %v599, %v623
    %v664 = vmax.f32 %v600, %v625
    %v665 = vmax.f32 %v601, %v627
    %v666 = vmax.f32 %v602, %v629
    %v667 = vmax.f32 %v603, %v631
    %v668 = vmax.f32 %v604, %v633
    %v669 = vmax.f32 %v605, %v635
    %v670 = vmax.f32 %v606, %v637
    %v671 = vmax.f32 %v607, %v639
    %v672 = vsub.f32 1.0, %v656
    %v673 = vsub.f32 1.0, %v657
    %v674 = vsub.f32 1.0, %v658
    %v675 = vsub.f32 1.0, %v659
    %v676 = vsub.f32 1.0, %v660
    %v677 = vsub.f32 1.0, %v661
    %v678 = vsub.f32 1.0, %v662
    %v679 = vsub.f32 1.0, %v663
    %v680 = vsub.f32 1.0, %v664
    %v681 = vsub.f32 1.0, %v665
    %v682 = vsub.f32 1.0, %v666
    %v683 = vsub.f32 1.0, %v667
    %v684 = vsub.f32 1.0, %v668
    %v685 = vsub.f32 1.0, %v669
    %v686 = vsub.f32 1.0, %v670
    %v687 = vsub.f32 1.0, %v671
    %s688 = sld [smem:[#allocation2]]
    %v689 = vstv %s688
    %v690 = vrcp.pop %v689
    %s691 = vtos %v690
    %s692 = smul.f32 2048.0, %s691
    %v693 = vld [vmem:[%s1] sm:$0xff]
    %v694 = vld [vmem:[%s1 + $0x8] sm:$0xff]
    %v695 = vld [vmem:[%s1 + $0x10] sm:$0xff]
    %v696 = vld [vmem:[%s1 + $0x18] sm:$0xff]
    %v697 = vld [vmem:[%s1 + $0x20] sm:$0xff]
    %v698 = vld [vmem:[%s1 + $0x28] sm:$0xff]
    %v699 = vld [vmem:[%s1 + $0x30] sm:$0xff]
    %v700 = vld [vmem:[%s1 + $0x38] sm:$0xff]
    %v701 = vld [vmem:[%s1 + $0x40] sm:$0xff]
    %v702 = vld [vmem:[%s1 + $0x48] sm:$0xff]
    %v703 = vld [vmem:[%s1 + $0x50] sm:$0xff]
    %v704 = vld [vmem:[%s1 + $0x58] sm:$0xff]
    %v705 = vld [vmem:[%s1 + $0x60] sm:$0xff]
    %v706 = vld [vmem:[%s1 + $0x68] sm:$0xff]
    %v707 = vld [vmem:[%s1 + $0x70] sm:$0xff]
    %v708 = vld [vmem:[%s1 + $0x78] sm:$0xff]
    %v709 = vmul.f32 %v693, %v672
    %v710 = vmul.f32 %v694, %v673
    %v711 = vmul.f32 %v695, %v674
    %v712 = vmul.f32 %v696, %v675
    %v713 = vmul.f32 %v697, %v676
    %v714 = vmul.f32 %v698, %v677
    %v715 = vmul.f32 %v699, %v678
    %v716 = vmul.f32 %v700, %v679
    %v717 = vmul.f32 %v701, %v680
    %v718 = vmul.f32 %v702, %v681
    %v719 = vmul.f32 %v703, %v682
    %v720 = vmul.f32 %v704, %v683
    %v721 = vmul.f32 %v705, %v684
    %v722 = vmul.f32 %v706, %v685
    %v723 = vmul.f32 %v707, %v686
    %v724 = vmul.f32 %v708, %v687
    %v725 = vstv %s692
    %v726 = vmul.f32 %v709, %v725
    %v727 = vmul.f32 %v710, %v725
    %v728 = vmul.f32 %v711, %v725
    %v729 = vmul.f32 %v712, %v725
    %v730 = vmul.f32 %v713, %v725
    %v731 = vmul.f32 %v714, %v725
    %v732 = vmul.f32 %v715, %v725
    %v733 = vmul.f32 %v716, %v725
    %v734 = vmul.f32 %v717, %v725
    %v735 = vmul.f32 %v718, %v725
    %v736 = vmul.f32 %v719, %v725
    %v737 = vmul.f32 %v720, %v725
    %v738 = vmul.f32 %v721, %v725
    %v739 = vmul.f32 %v722, %v725
    %v740 = vmul.f32 %v723, %v725
    %v741 = vmul.f32 %v724, %v725
    %vm742 = vcmask 130048
    %743 = vst.msk [vmem:[#allocation3] sm:$0xff] %vm742, %v726
    %744 = vst.msk [vmem:[#allocation3 + $0x8] sm:$0xff] %vm742, %v727
    %745 = vst.msk [vmem:[#allocation3 + $0x10] sm:$0xff] %vm742, %v728
    %746 = vst.msk [vmem:[#allocation3 + $0x18] sm:$0xff] %vm742, %v729
    %747 = vst.msk [vmem:[#allocation3 + $0x20] sm:$0xff] %vm742, %v730
    %748 = vst.msk [vmem:[#allocation3 + $0x28] sm:$0xff] %vm742, %v731
    %749 = vst.msk [vmem:[#allocation3 + $0x30] sm:$0xff] %vm742, %v732
    %750 = vst.msk [vmem:[#allocation3 + $0x38] sm:$0xff] %vm742, %v733
    %751 = vst.msk [vmem:[#allocation3 + $0x40] sm:$0xff] %vm742, %v734
    %752 = vst.msk [vmem:[#allocation3 + $0x48] sm:$0xff] %vm742, %v735
    %753 = vst.msk [vmem:[#allocation3 + $0x50] sm:$0xff] %vm742, %v736
    %754 = vst.msk [vmem:[#allocation3 + $0x58] sm:$0xff] %vm742, %v737
    %755 = vst.msk [vmem:[#allocation3 + $0x60] sm:$0xff] %vm742, %v738
    %756 = vst.msk [vmem:[#allocation3 + $0x68] sm:$0xff] %vm742, %v739
    %757 = vst.msk [vmem:[#allocation3 + $0x70] sm:$0xff] %vm742, %v740
    %758 = vst.msk [vmem:[#allocation3 + $0x78] sm:$0xff] %vm742, %v741
    // Predicated region
    $region14: #{dropblock.3} parent=1 // pred_check
      _
    $region15: #{dropblock.3} parent=1 // pred_check_branch
      %760 = sbr.rel (0) target = $region17
    $region16: #{dropblock.3} parent=1 // pred_region
      %s762 = ssub.s32 2048, 2048
      %763 = vsyncadd [#allocation4], %s762
      %s764 = sshll.u32 [#allocation3], 4
      %s765 = int_to_ptr.vmem [resolvable:$true] %s764
      %770 = dma.vmem_to_hbm [thread:$0]  %s765, 2048, %s3, [#allocation4], 128, 128, 8
    $region17: #{dropblock.3} parent=1 // pred_fallthru
      _
    // Predicated region
    $region18: #{dropblock.3} parent=1 // pred_check
      _
    $region19: #{dropblock.3} parent=1 // pred_check_branch
      %772 = sbr.rel (0) target = $region21
    $region20: #{dropblock.3} parent=1 // pred_region
      %773 = dma.done [#allocation4], 2048
    $region21: #{dropblock.3} parent=1 // pred_fallthru
      _
    %774 = vsyncpa [#allocation4], 1

// kernel: dropblock.2
$region0: #{dropblock.2}
  #allocation0 [shape = 'u32[]', space=smem, size = 0x4, offset = 0x4, fixed_abs, tag = 'smem constant byte address 0x4 - core index']
  #allocation1 [shape = 'u32[144,128]{1,0:T(1,128)}', space=vmem, size = 0x12000, scoped, tag = 'internal scratch']
  %s0 = inlined_call_operand.vmem [shape: f32[8,18,18], index: 0, kind: input, shape index: {}]
  %s1 = inlined_call_operand.hbm [shape: f32[1,1], index: 1, kind: output, shape index: {}]
  %s2 = sld [smem:[#allocation0]]
  $region18: #{dropblock.2} parent=0
    _
  %s4 = ssub.s32 1, %s2
  %s5 = scalar_select 0, %s4, %s2
  $region1: #{dropblock.2} parent=0
    #allocation2 [shape = 'u8[512]{0}', space=vmem, size = 0x400, scoped, tag = 'output window, operand 0, single buffered']
    #allocation3 [shape = 's32[1]{0}', space=sflag, size = 0x4, scoped, tag = 'scoped memory for dropblock.2']
    %6 = vsyncpa [#allocation3], 0
    // Predicated region
    $region2: #{dropblock.2} parent=1 // pred_check
      _
    $region3: #{dropblock.2} parent=1 // pred_check_branch
      %8 = sbr.rel (0) target = $region5
    $region4: #{dropblock.2} parent=1 // pred_region
      _
    $region5: #{dropblock.2} parent=1 // pred_fallthru
      _
    %p9 = scmp.eq.s32.totalorder 0, 0
    // Predicated region
    $region6: #{dropblock.2} parent=1 // pred_check
      %p10 = pneg %p9
    $region7: #{dropblock.2} parent=1 // pred_check_branch
      %12 = sbr.rel (%p10) target = $region9
    $region8: #{dropblock.2} parent=1 // pred_region
      %vm13 = vcmask 0
      %14 = vst.msk [vmem:[#allocation2] sm:$0x1] %vm13, 0.0
    $region9: #{dropblock.2} parent=1 // pred_fallthru
      _
    %v15 = vld [vmem:[%s0] sm:$0xff]
    %v16 = vld [vmem:[%s0 + $0x8] sm:$0xff]
    %v17 = vld [vmem:[%s0 + $0x18] sm:$0xff]
    %v18 = vld [vmem:[%s0 + $0x20] sm:$0xff]
    %v19 = vld [vmem:[%s0 + $0x30] sm:$0xff]
    %v20 = vld [vmem:[%s0 + $0x38] sm:$0xff]
    %v21 = vld [vmem:[%s0 + $0x48] sm:$0xff]
    %v22 = vld [vmem:[%s0 + $0x50] sm:$0xff]
    %v23 = vld [vmem:[%s0 + $0x60] sm:$0xff]
    %v24 = vld [vmem:[%s0 + $0x68] sm:$0xff]
    %v25 = vld [vmem:[%s0 + $0x78] sm:$0xff]
    %v26 = vld [vmem:[%s0 + $0x80] sm:$0xff]
    %v27 = vld [vmem:[%s0 + $0x90] sm:$0xff]
    %v28 = vld [vmem:[%s0 + $0x98] sm:$0xff]
    %v29 = vld [vmem:[%s0 + $0xa8] sm:$0xff]
    %v30 = vld [vmem:[%s0 + $0xb0] sm:$0xff]
    %vm31 = vcmp.lt.f32.partialorder %v15, 0.014512472
    %vm32 = vcmp.lt.f32.partialorder %v16, 0.014512472
    %vm33 = vcmp.lt.f32.partialorder %v17, 0.014512472
    %vm34 = vcmp.lt.f32.partialorder %v18, 0.014512472
    %vm35 = vcmp.lt.f32.partialorder %v19, 0.014512472
    %vm36 = vcmp.lt.f32.partialorder %v20, 0.014512472
    %vm37 = vcmp.lt.f32.partialorder %v21, 0.014512472
    %vm38 = vcmp.lt.f32.partialorder %v22, 0.014512472
    %vm39 = vcmp.lt.f32.partialorder %v23, 0.014512472
    %vm40 = vcmp.lt.f32.partialorder %v24, 0.014512472
    %vm41 = vcmp.lt.f32.partialorder %v25, 0.014512472
    %vm42 = vcmp.lt.f32.partialorder %v26, 0.014512472
    %vm43 = vcmp.lt.f32.partialorder %v27, 0.014512472
    %vm44 = vcmp.lt.f32.partialorder %v28, 0.014512472
    %vm45 = vcmp.lt.f32.partialorder %v29, 0.014512472
    %vm46 = vcmp.lt.f32.partialorder %v30, 0.014512472
    %v47 = vsel %vm31, 1, 0
    %v48 = vsel %vm32, 1, 0
    %v49 = vsel %vm33, 1, 0
    %v50 = vsel %vm34, 1, 0
    %v51 = vsel %vm35, 1, 0
    %v52 = vsel %vm36, 1, 0
    %v53 = vsel %vm37, 1, 0
    %v54 = vsel %vm38, 1, 0
    %v55 = vsel %vm39, 1, 0
    %v56 = vsel %vm40, 1, 0
    %v57 = vsel %vm41, 1, 0
    %v58 = vsel %vm42, 1, 0
    %v59 = vsel %vm43, 1, 0
    %v60 = vsel %vm44, 1, 0
    %v61 = vsel %vm45, 1, 0
    %v62 = vsel %vm46, 1, 0
    %v63 = vcvt.s32.f32 %v47
    %v64 = vcvt.s32.f32 %v48
    %v65 = vcvt.s32.f32 %v49
    %v66 = vcvt.s32.f32 %v50
    %v67 = vcvt.s32.f32 %v51
    %v68 = vcvt.s32.f32 %v52
    %v69 = vcvt.s32.f32 %v53
    %v70 = vcvt.s32.f32 %v54
    %v71 = vcvt.s32.f32 %v55
    %v72 = vcvt.s32.f32 %v56
    %v73 = vcvt.s32.f32 %v57
    %v74 = vcvt.s32.f32 %v58
    %v75 = vcvt.s32.f32 %v59
    %v76 = vcvt.s32.f32 %v60
    %v77 = vcvt.s32.f32 %v61
    %v78 = vcvt.s32.f32 %v62
    %95 = vrot.lane.b32.xlu0 %v63, 127
    %v96 = vpop.permute.xlu0 %95
    %97 = vrot.lane.b32.xlu0 %v64, 127
    %v98 = vpop.permute.xlu0 %97
    %99 = vrot.lane.b32.xlu0 %v65, 127
    %v100 = vpop.permute.xlu0 %99
    %101 = vrot.lane.b32.xlu0 %v66, 127
    %v102 = vpop.permute.xlu0 %101
    %103 = vrot.lane.b32.xlu0 %v67, 127
    %v104 = vpop.permute.xlu0 %103
    %105 = vrot.lane.b32.xlu0 %v68, 127
    %v106 = vpop.permute.xlu0 %105
    %107 = vrot.lane.b32.xlu0 %v69, 127
    %v108 = vpop.permute.xlu0 %107
    %109 = vrot.lane.b32.xlu0 %v70, 127
    %v110 = vpop.permute.xlu0 %109
    %111 = vrot.lane.b32.xlu0 %v71, 127
    %v112 = vpop.permute.xlu0 %111
    %113 = vrot.lane.b32.xlu0 %v72, 127
    %v114 = vpop.permute.xlu0 %113
    %115 = vrot.lane.b32.xlu0 %v73, 127
    %v116 = vpop.permute.xlu0 %115
    %117 = vrot.lane.b32.xlu0 %v74, 127
    %v118 = vpop.permute.xlu0 %117
    %119 = vrot.lane.b32.xlu0 %v75, 127
    %v120 = vpop.permute.xlu0 %119
    %121 = vrot.lane.b32.xlu0 %v76, 127
    %v122 = vpop.permute.xlu0 %121
    %123 = vrot.lane.b32.xlu0 %v77, 127
    %v124 = vpop.permute.xlu0 %123
    %125 = vrot.lane.b32.xlu0 %v78, 127
    %v126 = vpop.permute.xlu0 %125
    %v143 = vmax.f32 %v63, %v96
    %v144 = vmax.f32 %v64, %v98
    %v145 = vmax.f32 %v65, %v100
    %v146 = vmax.f32 %v66, %v102
    %v147 = vmax.f32 %v67, %v104
    %v148 = vmax.f32 %v68, %v106
    %v149 = vmax.f32 %v69, %v108
    %v150 = vmax.f32 %v70, %v110
    %v151 = vmax.f32 %v71, %v112
    %v152 = vmax.f32 %v72, %v114
    %v153 = vmax.f32 %v73, %v116
    %v154 = vmax.f32 %v74, %v118
    %v155 = vmax.f32 %v75, %v120
    %v156 = vmax.f32 %v76, %v122
    %v157 = vmax.f32 %v77, %v124
    %v158 = vmax.f32 %v78, %v126
    %159 = vrot.lane.b32.xlu0 %v63, 126
    %v160 = vpop.permute.xlu0 %159
    %161 = vrot.lane.b32.xlu0 %v64, 126
    %v162 = vpop.permute.xlu0 %161
    %163 = vrot.lane.b32.xlu0 %v65, 126
    %v164 = vpop.permute.xlu0 %163
    %165 = vrot.lane.b32.xlu0 %v66, 126
    %v166 = vpop.permute.xlu0 %165
    %167 = vrot.lane.b32.xlu0 %v67, 126
    %v168 = vpop.permute.xlu0 %167
    %169 = vrot.lane.b32.xlu0 %v68, 126
    %v170 = vpop.permute.xlu0 %169
    %171 = vrot.lane.b32.xlu0 %v69, 126
    %v172 = vpop.permute.xlu0 %171
    %173 = vrot.lane.b32.xlu0 %v70, 126
    %v174 = vpop.permute.xlu0 %173
    %175 = vrot.lane.b32.xlu0 %v71, 126
    %v176 = vpop.permute.xlu0 %175
    %177 = vrot.lane.b32.xlu0 %v72, 126
    %v178 = vpop.permute.xlu0 %177
    %179 = vrot.lane.b32.xlu0 %v73, 126
    %v180 = vpop.permute.xlu0 %179
    %181 = vrot.lane.b32.xlu0 %v74, 126
    %v182 = vpop.permute.xlu0 %181
    %183 = vrot.lane.b32.xlu0 %v75, 126
    %v184 = vpop.permute.xlu0 %183
    %185 = vrot.lane.b32.xlu0 %v76, 126
    %v186 = vpop.permute.xlu0 %185
    %187 = vrot.lane.b32.xlu0 %v77, 126
    %v188 = vpop.permute.xlu0 %187
    %189 = vrot.lane.b32.xlu0 %v78, 126
    %v190 = vpop.permute.xlu0 %189
    %v207 = vmax.f32 %v143, %v160
    %v208 = vmax.f32 %v144, %v162
    %v209 = vmax.f32 %v145, %v164
    %v210 = vmax.f32 %v146, %v166
    %v211 = vmax.f32 %v147, %v168
    %v212 = vmax.f32 %v148, %v170
    %v213 = vmax.f32 %v149, %v172
    %v214 = vmax.f32 %v150, %v174
    %v215 = vmax.f32 %v151, %v176
    %v216 = vmax.f32 %v152, %v178
    %v217 = vmax.f32 %v153, %v180
    %v218 = vmax.f32 %v154, %v182
    %v219 = vmax.f32 %v155, %v184
    %v220 = vmax.f32 %v156, %v186
    %v221 = vmax.f32 %v157, %v188
    %v222 = vmax.f32 %v158, %v190
    %v223 = vld [vmem:[%s0 + $0x1] sm:$0xff]
    %v224 = vld [vmem:[%s0 + $0x9] sm:$0xff]
    %v225 = vld [vmem:[%s0 + $0x19] sm:$0xff]
    %v226 = vld [vmem:[%s0 + $0x21] sm:$0xff]
    %v227 = vld [vmem:[%s0 + $0x31] sm:$0xff]
    %v228 = vld [vmem:[%s0 + $0x39] sm:$0xff]
    %v229 = vld [vmem:[%s0 + $0x49] sm:$0xff]
    %v230 = vld [vmem:[%s0 + $0x51] sm:$0xff]
    %v231 = vld [vmem:[%s0 + $0x61] sm:$0xff]
    %v232 = vld [vmem:[%s0 + $0x69] sm:$0xff]
    %v233 = vld [vmem:[%s0 + $0x79] sm:$0xff]
    %v234 = vld [vmem:[%s0 + $0x81] sm:$0xff]
    %v235 = vld [vmem:[%s0 + $0x91] sm:$0xff]
    %v236 = vld [vmem:[%s0 + $0x99] sm:$0xff]
    %v237 = vld [vmem:[%s0 + $0xa9] sm:$0xff]
    %v238 = vld [vmem:[%s0 + $0xb1] sm:$0xff]
    %vm239 = vcmp.lt.f32.partialorder %v223, 0.014512472
    %vm240 = vcmp.lt.f32.partialorder %v224, 0.014512472
    %vm241 = vcmp.lt.f32.partialorder %v225, 0.014512472
    %vm242 = vcmp.lt.f32.partialorder %v226, 0.014512472
    %vm243 = vcmp.lt.f32.partialorder %v227, 0.014512472
    %vm244 = vcmp.lt.f32.partialorder %v228, 0.014512472
    %vm245 = vcmp.lt.f32.partialorder %v229, 0.014512472
    %vm246 = vcmp.lt.f32.partialorder %v230, 0.014512472
    %vm247 = vcmp.lt.f32.partialorder %v231, 0.014512472
    %vm248 = vcmp.lt.f32.partialorder %v232, 0.014512472
    %vm249 = vcmp.lt.f32.partialorder %v233, 0.014512472
    %vm250 = vcmp.lt.f32.partialorder %v234, 0.014512472
    %vm251 = vcmp.lt.f32.partialorder %v235, 0.014512472
    %vm252 = vcmp.lt.f32.partialorder %v236, 0.014512472
    %vm253 = vcmp.lt.f32.partialorder %v237, 0.014512472
    %vm254 = vcmp.lt.f32.partialorder %v238, 0.014512472
    %v255 = vsel %vm239, 1, 0
    %v256 = vsel %vm240, 1, 0
    %v257 = vsel %vm241, 1, 0
    %v258 = vsel %vm242, 1, 0
    %v259 = vsel %vm243, 1, 0
    %v260 = vsel %vm244, 1, 0
    %v261 = vsel %vm245, 1, 0
    %v262 = vsel %vm246, 1, 0
    %v263 = vsel %vm247, 1, 0
    %v264 = vsel %vm248, 1, 0
    %v265 = vsel %vm249, 1, 0
    %v266 = vsel %vm250, 1, 0
    %v267 = vsel %vm251, 1, 0
    %v268 = vsel %vm252, 1, 0
    %v269 = vsel %vm253, 1, 0
    %v270 = vsel %vm254, 1, 0
    %v271 = vcvt.s32.f32 %v255
    %v272 = vcvt.s32.f32 %v256
    %v273 = vcvt.s32.f32 %v257
    %v274 = vcvt.s32.f32 %v258
    %v275 = vcvt.s32.f32 %v259
    %v276 = vcvt.s32.f32 %v260
    %v277 = vcvt.s32.f32 %v261
    %v278 = vcvt.s32.f32 %v262
    %v279 = vcvt.s32.f32 %v263
    %v280 = vcvt.s32.f32 %v264
    %v281 = vcvt.s32.f32 %v265
    %v282 = vcvt.s32.f32 %v266
    %v283 = vcvt.s32.f32 %v267
    %v284 = vcvt.s32.f32 %v268
    %v285 = vcvt.s32.f32 %v269
    %v286 = vcvt.s32.f32 %v270
    %v287 = vmax.f32 %v207, %v271
    %v288 = vmax.f32 %v208, %v272
    %v289 = vmax.f32 %v209, %v273
    %v290 = vmax.f32 %v210, %v274
    %v291 = vmax.f32 %v211, %v275
    %v292 = vmax.f32 %v212, %v276
    %v293 = vmax.f32 %v213, %v277
    %v294 = vmax.f32 %v214, %v278
    %v295 = vmax.f32 %v215, %v279
    %v296 = vmax.f32 %v216, %v280
    %v297 = vmax.f32 %v217, %v281
    %v298 = vmax.f32 %v218, %v282
    %v299 = vmax.f32 %v219, %v283
    %v300 = vmax.f32 %v220, %v284
    %v301 = vmax.f32 %v221, %v285
    %v302 = vmax.f32 %v222, %v286
    %319 = vrot.lane.b32.xlu0 %v271, 127
    %v320 = vpop.permute.xlu0 %319
    %321 = vrot.lane.b32.xlu0 %v272, 127
    %v322 = vpop.permute.xlu0 %321
    %323 = vrot.lane.b32.xlu0 %v273, 127
    %v324 = vpop.permute.xlu0 %323
    %325 = vrot.lane.b32.xlu0 %v274, 127
    %v326 = vpop.permute.xlu0 %325
    %327 = vrot.lane.b32.xlu0 %v275, 127
    %v328 = vpop.permute.xlu0 %327
    %329 = vrot.lane.b32.xlu0 %v276, 127
    %v330 = vpop.permute.xlu0 %329
    %331 = vrot.lane.b32.xlu0 %v277, 127
    %v332 = vpop.permute.xlu0 %331
    %333 = vrot.lane.b32.xlu0 %v278, 127
    %v334 = vpop.permute.xlu0 %333
    %335 = vrot.lane.b32.xlu0 %v279, 127
    %v336 = vpop.permute.xlu0 %335
    %337 = vrot.lane.b32.xlu0 %v280, 127
    %v338 = vpop.permute.xlu0 %337
    %339 = vrot.lane.b32.xlu0 %v281, 127
    %v340 = vpop.permute.xlu0 %339
    %341 = vrot.lane.b32.xlu0 %v282, 127
    %v342 = vpop.permute.xlu0 %341
    %343 = vrot.lane.b32.xlu0 %v283, 127
    %v344 = vpop.permute.xlu0 %343
    %345 = vrot.lane.b32.xlu0 %v284, 127
    %v346 = vpop.permute.xlu0 %345
    %347 = vrot.lane.b32.xlu0 %v285, 127
    %v348 = vpop.permute.xlu0 %347
    %349 = vrot.lane.b32.xlu0 %v286, 127
    %v350 = vpop.permute.xlu0 %349
    %v367 = vmax.f32 %v287, %v320
    %v368 = vmax.f32 %v288, %v322
    %v369 = vmax.f32 %v289, %v324
    %v370 = vmax.f32 %v290, %v326
    %v371 = vmax.f32 %v291, %v328
    %v372 = vmax.f32 %v292, %v330
    %v373 = vmax.f32 %v293, %v332
    %v374 = vmax.f32 %v294, %v334
    %v375 = vmax.f32 %v295, %v336
    %v376 = vmax.f32 %v296, %v338
    %v377 = vmax.f32 %v297, %v340
    %v378 = vmax.f32 %v298, %v342
    %v379 = vmax.f32 %v299, %v344
    %v380 = vmax.f32 %v300, %v346
    %v381 = vmax.f32 %v301, %v348
    %v382 = vmax.f32 %v302, %v350
    %383 = vrot.lane.b32.xlu0 %v271, 126
    %v384 = vpop.permute.xlu0 %383
    %385 = vrot.lane.b32.xlu0 %v272, 126
    %v386 = vpop.permute.xlu0 %385
    %387 = vrot.lane.b32.xlu0 %v273, 126
    %v388 = vpop.permute.xlu0 %387
    %389 = vrot.lane.b32.xlu0 %v274, 126
    %v390 = vpop.permute.xlu0 %389
    %391 = vrot.lane.b32.xlu0 %v275, 126
    %v392 = vpop.permute.xlu0 %391
    %393 = vrot.lane.b32.xlu0 %v276, 126
    %v394 = vpop.permute.xlu0 %393
    %395 = vrot.lane.b32.xlu0 %v277, 126
    %v396 = vpop.permute.xlu0 %395
    %397 = vrot.lane.b32.xlu0 %v278, 126
    %v398 = vpop.permute.xlu0 %397
    %399 = vrot.lane.b32.xlu0 %v279, 126
    %v400 = vpop.permute.xlu0 %399
    %401 = vrot.lane.b32.xlu0 %v280, 126
    %v402 = vpop.permute.xlu0 %401
    %403 = vrot.lane.b32.xlu0 %v281, 126
    %v404 = vpop.permute.xlu0 %403
    %405 = vrot.lane.b32.xlu0 %v282, 126
    %v406 = vpop.permute.xlu0 %405
    %407 = vrot.lane.b32.xlu0 %v283, 126
    %v408 = vpop.permute.xlu0 %407
    %409 = vrot.lane.b32.xlu0 %v284, 126
    %v410 = vpop.permute.xlu0 %409
    %411 = vrot.lane.b32.xlu0 %v285, 126
    %v412 = vpop.permute.xlu0 %411
    %413 = vrot.lane.b32.xlu0 %v286, 126
    %v414 = vpop.permute.xlu0 %413
    %v431 = vmax.f32 %v367, %v384
    %v432 = vmax.f32 %v368, %v386
    %v433 = vmax.f32 %v369, %v388
    %v434 = vmax.f32 %v370, %v390
    %v435 = vmax.f32 %v371, %v392
    %v436 = vmax.f32 %v372, %v394
    %v437 = vmax.f32 %v373, %v396
    %v438 = vmax.f32 %v374, %v398
    %v439 = vmax.f32 %v375, %v400
    %v440 = vmax.f32 %v376, %v402
    %v441 = vmax.f32 %v377, %v404
    %v442 = vmax.f32 %v378, %v406
    %v443 = vmax.f32 %v379, %v408
    %v444 = vmax.f32 %v380, %v410
    %v445 = vmax.f32 %v381, %v412
    %v446 = vmax.f32 %v382, %v414
    %v447 = vld [vmem:[%s0 + $0x2] sm:$0xff]
    %v448 = vld [vmem:[%s0 + $0xa] sm:$0xff]
    %v449 = vld [vmem:[%s0 + $0x1a] sm:$0xff]
    %v450 = vld [vmem:[%s0 + $0x22] sm:$0xff]
    %v451 = vld [vmem:[%s0 + $0x32] sm:$0xff]
    %v452 = vld [vmem:[%s0 + $0x3a] sm:$0xff]
    %v453 = vld [vmem:[%s0 + $0x4a] sm:$0xff]
    %v454 = vld [vmem:[%s0 + $0x52] sm:$0xff]
    %v455 = vld [vmem:[%s0 + $0x62] sm:$0xff]
    %v456 = vld [vmem:[%s0 + $0x6a] sm:$0xff]
    %v457 = vld [vmem:[%s0 + $0x7a] sm:$0xff]
    %v458 = vld [vmem:[%s0 + $0x82] sm:$0xff]
    %v459 = vld [vmem:[%s0 + $0x92] sm:$0xff]
    %v460 = vld [vmem:[%s0 + $0x9a] sm:$0xff]
    %v461 = vld [vmem:[%s0 + $0xaa] sm:$0xff]
    %v462 = vld [vmem:[%s0 + $0xb2] sm:$0xff]
    %vm463 = vcmp.lt.f32.partialorder %v447, 0.014512472
    %vm464 = vcmp.lt.f32.partialorder %v448, 0.014512472
    %vm465 = vcmp.lt.f32.partialorder %v449, 0.014512472
    %vm466 = vcmp.lt.f32.partialorder %v450, 0.014512472
    %vm467 = vcmp.lt.f32.partialorder %v451, 0.014512472
    %vm468 = vcmp.lt.f32.partialorder %v452, 0.014512472
    %vm469 = vcmp.lt.f32.partialorder %v453, 0.014512472
    %vm470 = vcmp.lt.f32.partialorder %v454, 0.014512472
    %vm471 = vcmp.lt.f32.partialorder %v455, 0.014512472
    %vm472 = vcmp.lt.f32.partialorder %v456, 0.014512472
    %vm473 = vcmp.lt.f32.partialorder %v457, 0.014512472
    %vm474 = vcmp.lt.f32.partialorder %v458, 0.014512472
    %vm475 = vcmp.lt.f32.partialorder %v459, 0.014512472
    %vm476 = vcmp.lt.f32.partialorder %v460, 0.014512472
    %vm477 = vcmp.lt.f32.partialorder %v461, 0.014512472
    %vm478 = vcmp.lt.f32.partialorder %v462, 0.014512472
    %v479 = vsel %vm463, 1, 0
    %v480 = vsel %vm464, 1, 0
    %v481 = vsel %vm465, 1, 0
    %v482 = vsel %vm466, 1, 0
    %v483 = vsel %vm467, 1, 0
    %v484 = vsel %vm468, 1, 0
    %v485 = vsel %vm469, 1, 0
    %v486 = vsel %vm470, 1, 0
    %v487 = vsel %vm471, 1, 0
    %v488 = vsel %vm472, 1, 0
    %v489 = vsel %vm473, 1, 0
    %v490 = vsel %vm474, 1, 0
    %v491 = vsel %vm475, 1, 0
    %v492 = vsel %vm476, 1, 0
    %v493 = vsel %vm477, 1, 0
    %v494 = vsel %vm478, 1, 0
    %v495 = vcvt.s32.f32 %v479
    %v496 = vcvt.s32.f32 %v480
    %v497 = vcvt.s32.f32 %v481
    %v498 = vcvt.s32.f32 %v482
    %v499 = vcvt.s32.f32 %v483
    %v500 = vcvt.s32.f32 %v484
    %v501 = vcvt.s32.f32 %v485
    %v502 = vcvt.s32.f32 %v486
    %v503 = vcvt.s32.f32 %v487
    %v504 = vcvt.s32.f32 %v488
    %v505 = vcvt.s32.f32 %v489
    %v506 = vcvt.s32.f32 %v490
    %v507 = vcvt.s32.f32 %v491
    %v508 = vcvt.s32.f32 %v492
    %v509 = vcvt.s32.f32 %v493
    %v510 = vcvt.s32.f32 %v494
    %v511 = vmax.f32 %v431, %v495
    %v512 = vmax.f32 %v432, %v496
    %v513 = vmax.f32 %v433, %v497
    %v514 = vmax.f32 %v434, %v498
    %v515 = vmax.f32 %v435, %v499
    %v516 = vmax.f32 %v436, %v500
    %v517 = vmax.f32 %v437, %v501
    %v518 = vmax.f32 %v438, %v502
    %v519 = vmax.f32 %v439, %v503
    %v520 = vmax.f32 %v440, %v504
    %v521 = vmax.f32 %v441, %v505
    %v522 = vmax.f32 %v442, %v506
    %v523 = vmax.f32 %v443, %v507
    %v524 = vmax.f32 %v444, %v508
    %v525 = vmax.f32 %v445, %v509
    %v526 = vmax.f32 %v446, %v510
    %543 = vrot.lane.b32.xlu0 %v495, 127
    %v544 = vpop.permute.xlu0 %543
    %545 = vrot.lane.b32.xlu0 %v496, 127
    %v546 = vpop.permute.xlu0 %545
    %547 = vrot.lane.b32.xlu0 %v497, 127
    %v548 = vpop.permute.xlu0 %547
    %549 = vrot.lane.b32.xlu0 %v498, 127
    %v550 = vpop.permute.xlu0 %549
    %551 = vrot.lane.b32.xlu0 %v499, 127
    %v552 = vpop.permute.xlu0 %551
    %553 = vrot.lane.b32.xlu0 %v500, 127
    %v554 = vpop.permute.xlu0 %553
    %555 = vrot.lane.b32.xlu0 %v501, 127
    %v556 = vpop.permute.xlu0 %555
    %557 = vrot.lane.b32.xlu0 %v502, 127
    %v558 = vpop.permute.xlu0 %557
    %559 = vrot.lane.b32.xlu0 %v503, 127
    %v560 = vpop.permute.xlu0 %559
    %561 = vrot.lane.b32.xlu0 %v504, 127
    %v562 = vpop.permute.xlu0 %561
    %563 = vrot.lane.b32.xlu0 %v505, 127
    %v564 = vpop.permute.xlu0 %563
    %565 = vrot.lane.b32.xlu0 %v506, 127
    %v566 = vpop.permute.xlu0 %565
    %567 = vrot.lane.b32.xlu0 %v507, 127
    %v568 = vpop.permute.xlu0 %567
    %569 = vrot.lane.b32.xlu0 %v508, 127
    %v570 = vpop.permute.xlu0 %569
    %571 = vrot.lane.b32.xlu0 %v509, 127
    %v572 = vpop.permute.xlu0 %571
    %573 = vrot.lane.b32.xlu0 %v510, 127
    %v574 = vpop.permute.xlu0 %573
    %v591 = vmax.f32 %v511, %v544
    %v592 = vmax.f32 %v512, %v546
    %v593 = vmax.f32 %v513, %v548
    %v594 = vmax.f32 %v514, %v550
    %v595 = vmax.f32 %v515, %v552
    %v596 = vmax.f32 %v516, %v554
    %v597 = vmax.f32 %v517, %v556
    %v598 = vmax.f32 %v518, %v558
    %v599 = vmax.f32 %v519, %v560
    %v600 = vmax.f32 %v520, %v562
    %v601 = vmax.f32 %v521, %v564
    %v602 = vmax.f32 %v522, %v566
    %v603 = vmax.f32 %v523, %v568
    %v604 = vmax.f32 %v524, %v570
    %v605 = vmax.f32 %v525, %v572
    %v606 = vmax.f32 %v526, %v574
    %607 = vrot.lane.b32.xlu0 %v495, 126
    %v608 = vpop.permute.xlu0 %607
    %609 = vrot.lane.b32.xlu0 %v496, 126
    %v610 = vpop.permute.xlu0 %609
    %611 = vrot.lane.b32.xlu0 %v497, 126
    %v612 = vpop.permute.xlu0 %611
    %613 = vrot.lane.b32.xlu0 %v498, 126
    %v614 = vpop.permute.xlu0 %613
    %615 = vrot.lane.b32.xlu0 %v499, 126
    %v616 = vpop.permute.xlu0 %615
    %617 = vrot.lane.b32.xlu0 %v500, 126
    %v618 = vpop.permute.xlu0 %617
    %619 = vrot.lane.b32.xlu0 %v501, 126
    %v620 = vpop.permute.xlu0 %619
    %621 = vrot.lane.b32.xlu0 %v502, 126
    %v622 = vpop.permute.xlu0 %621
    %623 = vrot.lane.b32.xlu0 %v503, 126
    %v624 = vpop.permute.xlu0 %623
    %625 = vrot.lane.b32.xlu0 %v504, 126
    %v626 = vpop.permute.xlu0 %625
    %627 = vrot.lane.b32.xlu0 %v505, 126
    %v628 = vpop.permute.xlu0 %627
    %629 = vrot.lane.b32.xlu0 %v506, 126
    %v630 = vpop.permute.xlu0 %629
    %631 = vrot.lane.b32.xlu0 %v507, 126
    %v632 = vpop.permute.xlu0 %631
    %633 = vrot.lane.b32.xlu0 %v508, 126
    %v634 = vpop.permute.xlu0 %633
    %635 = vrot.lane.b32.xlu0 %v509, 126
    %v636 = vpop.permute.xlu0 %635
    %637 = vrot.lane.b32.xlu0 %v510, 126
    %v638 = vpop.permute.xlu0 %637
    %v655 = vmax.f32 %v591, %v608
    %v656 = vmax.f32 %v592, %v610
    %v657 = vmax.f32 %v593, %v612
    %v658 = vmax.f32 %v594, %v614
    %v659 = vmax.f32 %v595, %v616
    %v660 = vmax.f32 %v596, %v618
    %v661 = vmax.f32 %v597, %v620
    %v662 = vmax.f32 %v598, %v622
    %v663 = vmax.f32 %v599, %v624
    %v664 = vmax.f32 %v600, %v626
    %v665 = vmax.f32 %v601, %v628
    %v666 = vmax.f32 %v602, %v630
    %v667 = vmax.f32 %v603, %v632
    %v668 = vmax.f32 %v604, %v634
    %v669 = vmax.f32 %v605, %v636
    %v670 = vmax.f32 %v606, %v638
    %v671 = vsub.f32 1.0, %v655
    %v672 = vsub.f32 1.0, %v656
    %v673 = vsub.f32 1.0, %v657
    %v674 = vsub.f32 1.0, %v658
    %v675 = vsub.f32 1.0, %v659
    %v676 = vsub.f32 1.0, %v660
    %v677 = vsub.f32 1.0, %v661
    %v678 = vsub.f32 1.0, %v662
    %v679 = vsub.f32 1.0, %v663
    %v680 = vsub.f32 1.0, %v664
    %v681 = vsub.f32 1.0, %v665
    %v682 = vsub.f32 1.0, %v666
    %v683 = vsub.f32 1.0, %v667
    %v684 = vsub.f32 1.0, %v668
    %v685 = vsub.f32 1.0, %v669
    %v686 = vsub.f32 1.0, %v670
    %v687 = vld [vmem:[#allocation2] sm:$0x1]
    %vm688 = vcmask 130048
    %v689 = vsel %vm688, %v671, 0.0
    %v690 = vsel %vm688, %v672, 0.0
    %v691 = vadd.f32 %v689, %v690
    %v692 = vsel %vm688, %v673, 0.0
    %v693 = vadd.f32 %v691, %v692
    %v694 = vsel %vm688, %v674, 0.0
    %v695 = vadd.f32 %v693, %v694
    %v696 = vsel %vm688, %v675, 0.0
    %v697 = vadd.f32 %v695, %v696
    %v698 = vsel %vm688, %v676, 0.0
    %v699 = vadd.f32 %v697, %v698
    %v700 = vsel %vm688, %v677, 0.0
    %v701 = vadd.f32 %v699, %v700
    %v702 = vsel %vm688, %v678, 0.0
    %v703 = vadd.f32 %v701, %v702
    %v704 = vsel %vm688, %v679, 0.0
    %v705 = vadd.f32 %v703, %v704
    %v706 = vsel %vm688, %v680, 0.0
    %v707 = vadd.f32 %v705, %v706
    %v708 = vsel %vm688, %v681, 0.0
    %v709 = vadd.f32 %v707, %v708
    %v710 = vsel %vm688, %v682, 0.0
    %v711 = vadd.f32 %v709, %v710
    %v712 = vsel %vm688, %v683, 0.0
    %v713 = vadd.f32 %v711, %v712
    %v714 = vsel %vm688, %v684, 0.0
    %v715 = vadd.f32 %v713, %v714
    %v716 = vsel %vm688, %v685, 0.0
    %v717 = vadd.f32 %v715, %v716
    %v718 = vsel %vm688, %v686, 0.0
    %v719 = vadd.f32 %v717, %v718
    %720 = vadd.xlane.f32.xlu0 %v719
    %v721 = vpop.xlane.xlu0 %720
    %v722 = vrot.slane %v721, 4
    %v723 = vadd.f32 %v721, %v722
    %v724 = vrot.slane %v723, 2
    %v725 = vadd.f32 %v723, %v724
    %v726 = vrot.slane %v725, 1
    %v727 = vadd.f32 %v725, %v726
    %s728 = vtos %v727
    %v729 = vstv %s728
    %v730 = vadd.f32 %v687, %v729
    %vm731 = vcmask 0
    %732 = vst.msk [vmem:[#allocation2] sm:$0x1] %vm731, %v730
    // Predicated region
    $region10: #{dropblock.2} parent=1 // pred_check
      _
    $region11: #{dropblock.2} parent=1 // pred_check_branch
      %734 = sbr.rel (0) target = $region13
    $region12: #{dropblock.2} parent=1 // pred_region
      %s736 = ssub.s32 16, 16
      %737 = vsyncadd [#allocation3], %s736
      %s739 = sshll.u32 [#allocation2], 4
      %s740 = int_to_ptr.vmem [resolvable:$true] %s739
      %742 = dma.vmem_to_hbm [thread:$0]  %s740, 16, %s1, [#allocation3]
    $region13: #{dropblock.2} parent=1 // pred_fallthru
      _
    // Predicated region
    $region14: #{dropblock.2} parent=1 // pred_check
      _
    $region15: #{dropblock.2} parent=1 // pred_check_branch
      %744 = sbr.rel (0) target = $region17
    $region16: #{dropblock.2} parent=1 // pred_region
      %745 = dma.done [#allocation3], 16
    $region17: #{dropblock.2} parent=1 // pred_fallthru
      _
    %746 = vsyncpa [#allocation3], 1

</llo_original>
